<compile_context>
chip_gen: v7x
topology: tpu7x:2x2x1
jax: 0.10.0
libtpu: 0.0.40
codegen_flags: <defaults>
</compile_context>

<pallas_src>
import functools

import jax
import jax.numpy as jnp
from jax import lax
from jax.experimental import pallas as pl
from jax.experimental.pallas import tpu as pltpu


def _round_up(x, m):
    return (x + m - 1) // m * m


def gnn_layer_kernel(first_ref, last_ref,               # scalar prefetch (SMEM)
                     x_ref, obj_ref,                    # streamed edge tiles
                     w1_ref, ws_attn_ref, w_alpha_ref, b_alpha_ref, wh_ref,
                     hidden_new_ref, alpha_ref, *, tn):
    i = pl.program_id(0)
    te = x_ref.shape[0]

    # Zero the resident output block on the first edge tile.
    @pl.when(i == 0)
    def _init():
        hidden_new_ref[...] = jnp.zeros_like(hidden_new_ref)

    # message = W1(hs + hr + h_sub)   (x is the pre-fused sum)        [TE, IN]
    message = jnp.dot(x_ref[...], w1_ref[...],
                      preferred_element_type=jnp.float32)

    # alpha = sigmoid(w_alpha(ReLU(Ws_attn(message))))                [TE, 1]
    attn = jnp.maximum(
        jnp.dot(message, ws_attn_ref[...], preferred_element_type=jnp.float32),
        0.0)
    # [TE, ATTN] x [ATTN] contraction as VPU multiply + lane reduce (an N=1
    # MXU matmul would waste the systolic array).
    logits = jnp.sum(attn * w_alpha_ref[...], axis=-1, keepdims=True)
    alpha = jax.nn.sigmoid(logits + b_alpha_ref[0, 0])                # [TE, 1]

    # Compact lane-dense alpha writeback: relayout the [TE,1] column into a
    # [1,TE] row (XLU transpose; that slot is otherwise idle) -> 4 B/edge.
    alpha_ref[...] = jnp.transpose(jnp.broadcast_to(alpha, (te, 128)))[0:1, :]

    # Per-tile W_h: scatter-sum is linear, so W_h(sum) == sum(W_h(.)), which
    # removes the [N, IN] accumulator scratch entirely.
    weighted = alpha * message                                        # [TE, IN]
    wm = jnp.dot(weighted, wh_ref[...],
                 preferred_element_type=jnp.float32)                  # [TE, OUT]
    wm_bf16 = wm.astype(jnp.bfloat16)      # bf16 MXU operand, f32 accumulate

    # Scatter-add into hidden_new over only the node chunks this (obj-sorted)
    # edge tile touches; bounds come from the scalar-prefetched arrays.
    obj = obj_ref[...]                                                # [TE, 1]
    node_iota = lax.broadcasted_iota(jnp.int32, (te, tn), 1)          # hoisted

    def scatter_chunk(c, carry):
        base = pl.multiple_of(c * tn, tn)
        onehot = ((obj - base) == node_iota).astype(jnp.bfloat16)     # [TE, TN]
        partial = lax.dot_general(
            onehot, wm_bf16, (((0,), (0,)), ((), ())),
            preferred_element_type=jnp.float32)                       # [TN, OUT]
        hidden_new_ref[pl.ds(base, tn), :] += partial
        return carry

    lax.fori_loop(first_ref[i], last_ref[i] + 1, scatter_chunk, 0)


def init_params(key, in_dim, out_dim, attn_dim, n_rel):
    ks = jax.random.split(key, 6)
    scale = 0.1
    return dict(
        rela_embed=jax.random.normal(ks[0], (n_rel, in_dim), jnp.float32) * scale,
        W1=jax.random.normal(ks[1], (in_dim, in_dim), jnp.float32) * scale,
        # Wr_attn exists in the module __init__ but is unused in forward.
        Wr_attn=jax.random.normal(ks[2], (in_dim, attn_dim), jnp.float32) * scale,
        Ws_attn=jax.random.normal(ks[3], (in_dim, attn_dim), jnp.float32) * scale,
        w_alpha=jax.random.normal(ks[4], (attn_dim, 1), jnp.float32) * scale,
        b_alpha=jnp.zeros((1, 1), jnp.float32),
        W_h=jax.random.normal(ks[5], (in_dim, out_dim), jnp.float32) * scale,
    )


def gnn_layer_forward(params, q_sub, hidden, edges, n_node, old_nodes_new_idx,
                      entity_pretrain_emb, h_sub, *, te=256, tn=256):
    # q_sub, old_nodes_new_idx, entity_pretrain_emb are unused in the PyTorch
    # forward as well; kept in the signature for parity.
    del q_sub, old_nodes_new_idx, entity_pretrain_emb
    assert te % 8 == 0 and tn % 128 == 0

    in_dim = hidden.shape[1]
    attn_dim = params["Ws_attn"].shape[1]
    out_dim = params["W_h"].shape[1]

    # TODO(synk): if production feature dims are genuinely tiny, using the
    # true widths (block last dim == full array dim is legal) instead of
    # padding to 128 cuts streamed bytes ~4x; kept lane-aligned here.
    in_pad = _round_up(in_dim, 128)
    attn_pad = _round_up(attn_dim, 128)
    out_pad = _round_up(out_dim, 128)

    e = edges.shape[0]
    assert e > 0
    e_pad = _round_up(e, te)
    n_pad = _round_up(max(n_node, 1), tn)
    grid_e = e_pad // te
    n_chunks = n_pad // tn

    sub = edges[:, 4]
    rel = edges[:, 2]
    obj = edges[:, 5].astype(jnp.int32)

    # Sort edges by destination node so each edge tile scatters into a small,
    # contiguous range of node chunks (bounds scalar-prefetched below).
    order = jnp.argsort(obj)
    sub_s = sub[order]
    rel_s = rel[order]
    obj_s = obj[order]
    hsub_s = h_sub[order]

    # Single fused edge stream x = hidden[sub] + rela_embed[rel] + h_sub
    # (XLA fuses the adds into the gathers) -> one [E_PAD, IN_PAD] stream.
    hidden_p = jnp.pad(hidden, ((0, 0), (0, in_pad - in_dim)))
    rela_p = jnp.pad(params["rela_embed"], ((0, 0), (0, in_pad - in_dim)))
    x = (jnp.take(hidden_p, sub_s, axis=0) + jnp.take(rela_p, rel_s, axis=0)
         + jnp.pad(hsub_s, ((0, 0), (0, in_pad - in_dim))))
    x = jnp.pad(x, ((0, e_pad - e), (0, 0)))

    # Padded tail edges carry zero features (=> zero scatter contribution);
    # give them the max real obj so the last tile's chunk range stays tight.
    pad_obj = obj_s[e - 1]
    obj_p = jnp.concatenate(
        [obj_s, jnp.full((e_pad - e,), pad_obj, jnp.int32)])[:, None]

    # Per-edge-tile [first_chunk, last_chunk] node-chunk bounds (obj sorted).
    obj_tiles = obj_p[:, 0].reshape(grid_e, te)
    first_chunk = (obj_tiles[:, 0] // tn).astype(jnp.int32)
    last_chunk = (obj_tiles[:, -1] // tn).astype(jnp.int32)

    w1_p = jnp.pad(params["W1"], ((0, in_pad - in_dim), (0, in_pad - in_dim)))
    ws_p = jnp.pad(params["Ws_attn"],
                   ((0, in_pad - in_dim), (0, attn_pad - attn_dim)))
    walpha_row = jnp.pad(params["w_alpha"].T, ((0, 0), (0, attn_pad - attn_dim)))
    wh_p = jnp.pad(params["W_h"], ((0, in_pad - in_dim), (0, out_pad - out_dim)))
    b_alpha = params["b_alpha"].reshape(1, 1)

    kernel = functools.partial(gnn_layer_kernel, tn=tn)

    # With obj-sorted edges, consecutive tiles' chunk ranges overlap by <= 1
    # chunk, so total chunk visits <= n_chunks + grid_e.
    chunk_visits = n_chunks + grid_e
    cost = pl.CostEstimate(
        flops=int(2 * e_pad * in_pad * (in_pad + attn_pad + out_pad)
                  + 2 * chunk_visits * te * tn * out_pad),
        transcendentals=int(e_pad),
        bytes_accessed=int(4 * (e_pad * in_pad + 2 * e_pad + n_pad * out_pad
                                + in_pad * (in_pad + attn_pad + out_pad)
                                + attn_pad + 1 + 2 * grid_e)),
    )

    # VMEM budget: double-buffered edge streams + single resident hidden_new
    # block + resident weights; generation-aware cap (v7x = 64 MiB physical,
    # v5e/v6e = 128 MiB) with headroom left for Mosaic-internal scratch.
    vmem_need = 4 * (2 * te * in_pad                 # x tiles (x2 buffers)
                     + 2 * te * 128                  # obj tiles (tile-padded)
                     + 2 * 8 * te                    # alpha row tiles
                     + n_pad * out_pad               # resident hidden_new
                     + 2 * in_pad * (in_pad + attn_pad + out_pad)   # weights
                     + te * (in_pad + attn_pad + out_pad + tn + 256))  # live vals
    try:
        vmem_cap = int(getattr(pltpu.get_tpu_info(), "vmem_capacity_bytes",
                               64 * 1024 * 1024))
    except Exception:
        vmem_cap = 64 * 1024 * 1024
    vmem_limit = int(min(max(32 * 1024 * 1024, 2 * vmem_need),
                         (3 * vmem_cap) // 4))

    hidden_new_p, alpha_rows = pl.pallas_call(
        kernel,
        out_shape=(jax.ShapeDtypeStruct((n_pad, out_pad), jnp.float32),
                   jax.ShapeDtypeStruct((1, e_pad), jnp.float32)),
        grid_spec=pltpu.PrefetchScalarGridSpec(
            num_scalar_prefetch=2,
            grid=(grid_e,),
            in_specs=[
                pl.BlockSpec((te, in_pad), lambda i, fc, lc: (i, 0)),       # x
                pl.BlockSpec((te, 1), lambda i, fc, lc: (i, 0)),            # obj
                pl.BlockSpec((in_pad, in_pad), lambda i, fc, lc: (0, 0)),   # W1
                pl.BlockSpec((in_pad, attn_pad), lambda i, fc, lc: (0, 0)),  # Ws_attn
                pl.BlockSpec((1, attn_pad), lambda i, fc, lc: (0, 0)),      # w_alpha
                pl.BlockSpec(memory_space=pltpu.MemorySpace.SMEM),          # b_alpha
                pl.BlockSpec((in_pad, out_pad), lambda i, fc, lc: (0, 0)),  # W_h
            ],
            out_specs=(
                pl.BlockSpec((n_pad, out_pad), lambda i, fc, lc: (0, 0)),   # hidden_new
                pl.BlockSpec((1, te), lambda i, fc, lc: (0, i)),            # alpha row
            ),
        ),
        compiler_params=pltpu.CompilerParams(
            dimension_semantics=("arbitrary",),      # accumulator carried over E
            vmem_limit_bytes=vmem_limit),
        cost_estimate=cost,
    )(first_chunk, last_chunk, x, obj_p, w1_p, ws_p, walpha_row, b_alpha, wh_p)

    hidden_new = hidden_new_p[:n_node, :out_dim]
    # Un-sort alpha back to the caller's original edge order.
    alpha = alpha_rows[0, :e][jnp.argsort(order)][:, None]
    return hidden_new, alpha


def reference_forward(params, hidden, edges, n_node, h_sub):
    sub = edges[:, 4]
    rel = edges[:, 2]
    obj = edges[:, 5]
    hs = hidden[sub]
    hr = params["rela_embed"][rel]
    message = (hs + hr + h_sub) @ params["W1"]
    alpha = jax.nn.sigmoid(
        jax.nn.relu(message @ params["Ws_attn"]) @ params["w_alpha"]
        + params["b_alpha"][0, 0])
    message = alpha * message
    msg_agg = jax.ops.segment_sum(message, obj, num_segments=n_node)
    return msg_agg @ params["W_h"], alpha


if __name__ == "__main__":
    in_dim, out_dim, attn_dim, n_rel = 32, 32, 16, 8
    n_node, n_edges = 200, 500      # pads to N_PAD=256 (1 node chunk),
                                    # E_PAD=512 (2 edge tiles of 256)

    key = jax.random.PRNGKey(0)
    k_param, k_hid, k_edge, k_hsub, k_qsub = jax.random.split(key, 5)

    params = init_params(k_param, in_dim, out_dim, attn_dim, n_rel)

    hidden = jax.random.normal(k_hid, (n_node, in_dim), jnp.float32)
    ek = jax.random.split(k_edge, 3)
    sub = jax.random.randint(ek[0], (n_edges,), 0, n_node, jnp.int32)
    rel = jax.random.randint(ek[1], (n_edges,), 0, n_rel, jnp.int32)
    obj = jax.random.randint(ek[2], (n_edges,), 0, n_node, jnp.int32)
    zeros = jnp.zeros((n_edges,), jnp.int32)
    # edges columns: [_, _, rel, _, sub, obj]  (matches edges[:,2], [:,4], [:,5])
    edges = jnp.stack([zeros, zeros, rel, zeros, sub, obj], axis=1)

    h_sub = jax.random.normal(k_hsub, (n_edges, in_dim), jnp.float32)
    q_sub = jax.random.randint(k_qsub, (n_edges,), 0, n_node, jnp.int32)
    old_nodes_new_idx = jnp.arange(n_node, dtype=jnp.int32)          # unused
    entity_pretrain_emb = jnp.zeros((n_node, in_dim), jnp.float32)   # unused

    hidden_new, alpha = gnn_layer_forward(
        params, q_sub, hidden, edges, n_node, old_nodes_new_idx,
        entity_pretrain_emb, h_sub)
    jax.block_until_ready((hidden_new, alpha))

    ref_hidden_new, ref_alpha = reference_forward(params, hidden, edges,
                                                  n_node, h_sub)
    assert hidden_new.shape == (n_node, out_dim)
    assert alpha.shape == (n_edges, 1)
    # alpha stays on a pure f32 path (tight match); hidden_new goes through
    # bf16 scatter MXU operands (exact one-hot, bf16-rounded messages) -> the
    # tolerance is loosened accordingly.
    assert jnp.allclose(alpha, ref_alpha, atol=1e-4, rtol=1e-4)
    assert jnp.allclose(hidden_new, ref_hidden_new, atol=1e-2, rtol=1e-2)

    print("KERNEL_OK")
</pallas_src>

<mosaic_0001>
module attributes {stable_mosaic.version = 11 : i64} {
  func.func @gnn_layer_kernel(%arg0: i32, %arg1: memref<2xi32, #tpu.memory_space<smem>>, %arg2: memref<2xi32, #tpu.memory_space<smem>>, %arg3: memref<256x128xf32, #tpu.memory_space<vmem>>, %arg4: memref<256x1xi32, #tpu.memory_space<vmem>>, %arg5: memref<128x128xf32, #tpu.memory_space<vmem>>, %arg6: memref<128x128xf32, #tpu.memory_space<vmem>>, %arg7: memref<1x128xf32, #tpu.memory_space<vmem>>, %arg8: memref<1x1xf32, #tpu.memory_space<smem>>, %arg9: memref<128x128xf32, #tpu.memory_space<vmem>>, %arg10: memref<256x128xf32, #tpu.memory_space<vmem>>, %arg11: memref<1x256xf32, #tpu.memory_space<vmem>>) attributes {dimension_semantics = [#tpu.dimension_semantics<arbitrary>], iteration_bounds = array<i64: 2>, scalar_prefetch = 2 : i64, scratch_operands = 0 : i64, tpu.core_type = #tpu.core_type<tc>, window_params = [{transform_indices = @transform_0, window_bounds = array<i64: 256, 128>}, {transform_indices = @transform_1, window_bounds = array<i64: 256, 1>}, {pipeline_mode = #tpu.pipeline_mode<synchronous>, transform_indices = @transform_2, window_bounds = array<i64: 128, 128>}, {pipeline_mode = #tpu.pipeline_mode<synchronous>, transform_indices = @transform_3, window_bounds = array<i64: 128, 128>}, {pipeline_mode = #tpu.pipeline_mode<synchronous>, transform_indices = @transform_4, window_bounds = array<i64: 1, 128>}, {transform_indices = @transform_5, window_bounds = array<i64: 1, 1>}, {pipeline_mode = #tpu.pipeline_mode<synchronous>, transform_indices = @transform_6, window_bounds = array<i64: 128, 128>}, {pipeline_mode = #tpu.pipeline_mode<synchronous>, transform_indices = @transform_7, window_bounds = array<i64: 256, 128>}, {transform_indices = @transform_8, window_bounds = array<i64: 1, 256>}]} {
    %c0_i32 = arith.constant 0 : i32
    %0 = arith.cmpi eq, %arg0, %c0_i32 : i32
    %1 = arith.extui %0 : i1 to i32
    %c0_i32_0 = arith.constant 0 : i32
    %2 = arith.cmpi ne, %1, %c0_i32_0 : i32
    scf.if %2 {
      %cst_23 = arith.constant 0.000000e+00 : f32
      %42 = vector.broadcast %cst_23 : f32 to vector<256x128xf32>
      %c0_24 = arith.constant 0 : index
      %c0_25 = arith.constant 0 : index
      %43 = vector.load %arg10[%c0_24, %c0_25] : memref<256x128xf32, #tpu.memory_space<vmem>>, vector<256x128xf32>
      tpu.vector_store %arg10[%c0_24, %c0_25], %42 {strides = array<i32>} : memref<256x128xf32, #tpu.memory_space<vmem>>, vector<256x128xf32>,
    } else {
    }
    %c0 = arith.constant 0 : index
    %c0_1 = arith.constant 0 : index
    %3 = vector.load %arg3[%c0, %c0_1] : memref<256x128xf32, #tpu.memory_space<vmem>>, vector<256x128xf32>
    %c0_2 = arith.constant 0 : index
    %c0_3 = arith.constant 0 : index
    %4 = vector.load %arg5[%c0_2, %c0_3] : memref<128x128xf32, #tpu.memory_space<vmem>>, vector<128x128xf32>
    %cst = arith.constant dense<0.000000e+00> : vector<256x128xf32>
    %5 = tpu.matmul %3, %4, %cst {dimension_numbers = #tpu.dot_dimension_numbers<[1], [0], [0], [1], [0, 0, 1, 1], [], []>} : vector<256x128xf32>, vector<128x128xf32>, vector<256x128xf32> -> vector<256x128xf32>
    %c0_4 = arith.constant 0 : index
    %c0_5 = arith.constant 0 : index
    %6 = vector.load %arg6[%c0_4, %c0_5] : memref<128x128xf32, #tpu.memory_space<vmem>>, vector<128x128xf32>
    %cst_6 = arith.constant dense<0.000000e+00> : vector<256x128xf32>
    %7 = tpu.matmul %5, %6, %cst_6 {dimension_numbers = #tpu.dot_dimension_numbers<[1], [0], [0], [1], [0, 0, 1, 1], [], []>} : vector<256x128xf32>, vector<128x128xf32>, vector<256x128xf32> -> vector<256x128xf32>
    %cst_7 = arith.constant 0.000000e+00 : f32
    %8 = vector.broadcast %cst_7 : f32 to vector<256x128xf32>
    %9 = arith.maximumf %7, %8 : vector<256x128xf32>
    %c0_8 = arith.constant 0 : index
    %c0_9 = arith.constant 0 : index
    %10 = vector.load %arg7[%c0_8, %c0_9] : memref<1x128xf32, #tpu.memory_space<vmem>>, vector<1x128xf32>
    %11 = vector.broadcast %10 : vector<1x128xf32> to vector<256x128xf32>
    %12 = arith.mulf %9, %11 : vector<256x128xf32>
    %cst_10 = arith.constant dense<0.000000e+00> : vector<256xf32>
    %13 = vector.multi_reduction <add>, %12, %cst_10 [1] : vector<256x128xf32> to vector<256xf32>
    %14 = vector.shape_cast %13 : vector<256xf32> to vector<256x1xf32>
    %c0_11 = arith.constant 0 : index
    %c0_12 = arith.constant 0 : index
    %15 = memref.load %arg8[%c0_11, %c0_12] : memref<1x1xf32, #tpu.memory_space<smem>>
    %16 = vector.broadcast %15 : f32 to vector<256x1xf32>
    %17 = arith.addf %14, %16 : vector<256x1xf32>
    %18 = arith.negf %17 : vector<256x1xf32>
    %19 = math.exp %18 : vector<256x1xf32>
    %cst_13 = arith.constant 1.000000e+00 : f32
    %20 = vector.broadcast %cst_13 : f32 to vector<256x1xf32>
    %21 = arith.addf %20, %19 : vector<256x1xf32>
    %22 = arith.divf %20, %21 : vector<256x1xf32>
    %23 = vector.shape_cast %22 : vector<256x1xf32> to vector<256x1xf32>
    %24 = vector.broadcast %23 : vector<256x1xf32> to vector<256x128xf32>
    %25 = tpu.transpose %24, [1, 0] : vector<256x128xf32> -> vector<128x256xf32>
    %26 = vector.extract_strided_slice %25 {offsets = [0, 0], sizes = [1, 256], strides = [1, 1]} : vector<128x256xf32> to vector<1x256xf32>
    %c0_14 = arith.constant 0 : index
    %c0_15 = arith.constant 0 : index
    %27 = vector.load %arg11[%c0_14, %c0_15] : memref<1x256xf32, #tpu.memory_space<vmem>>, vector<1x256xf32>
    tpu.vector_store %arg11[%c0_14, %c0_15], %26 {strides = array<i32>} : memref<1x256xf32, #tpu.memory_space<vmem>>, vector<1x256xf32>,
    %28 = vector.broadcast %22 : vector<256x1xf32> to vector<256x128xf32>
    %29 = arith.mulf %28, %5 : vector<256x128xf32>
    %c0_16 = arith.constant 0 : index
    %c0_17 = arith.constant 0 : index
    %30 = vector.load %arg9[%c0_16, %c0_17] : memref<128x128xf32, #tpu.memory_space<vmem>>, vector<128x128xf32>
    %cst_18 = arith.constant dense<0.000000e+00> : vector<256x128xf32>
    %31 = tpu.matmul %29, %30, %cst_18 {dimension_numbers = #tpu.dot_dimension_numbers<[1], [0], [0], [1], [0, 0, 1, 1], [], []>} : vector<256x128xf32>, vector<128x128xf32>, vector<256x128xf32> -> vector<256x128xf32>
    %32 = arith.truncf %31 : vector<256x128xf32> to vector<256x128xbf16>
    %c0_19 = arith.constant 0 : index
    %c0_20 = arith.constant 0 : index
    %33 = vector.load %arg4[%c0_19, %c0_20] : memref<256x1xi32, #tpu.memory_space<vmem>>, vector<256x1xi32>
    %34 = tpu.iota {dimensions = array<i32: 1>} : vector<256x256xi32>
    %35 = arith.index_cast %arg0 : i32 to index
    %36 = memref.load %arg1[%35] : memref<2xi32, #tpu.memory_space<smem>>
    %37 = arith.index_cast %arg0 : i32 to index
    %38 = memref.load %arg2[%37] : memref<2xi32, #tpu.memory_space<smem>>
    %c1_i32 = arith.constant 1 : i32
    %39 = arith.addi %38, %c1_i32 : i32
    %c0_i32_21 = arith.constant 0 : i32
    %40 = arith.subi %39, %36 : i32
    %41 = arith.addi %36, %40 : i32
    %c1_i32_22 = arith.constant 1 : i32
    scf.for %arg12 = %36 to %41 step %c1_i32_22  : i32 {
      %c256_i32 = arith.constant 256 : i32
      %42 = arith.muli %arg12, %c256_i32 : i32
      %43 = tpu.assume_multiple %42, 256 : i32
      %44 = vector.broadcast %43 : i32 to vector<256x1xi32>
      %45 = arith.subi %33, %44 : vector<256x1xi32>
      %46 = vector.broadcast %45 : vector<256x1xi32> to vector<256x256xi32>
      %47 = arith.cmpi eq, %46, %34 : vector<256x256xi32>
      %48 = arith.extui %47 : vector<256x256xi1> to vector<256x256xi32>
      %49 = arith.sitofp %48 : vector<256x256xi32> to vector<256x256xf32>
      %50 = arith.truncf %49 : vector<256x256xf32> to vector<256x256xbf16>
      %cst_23 = arith.constant dense<0.000000e+00> : vector<256x128xf32>
      %51 = tpu.matmul %50, %32, %cst_23 {dimension_numbers = #tpu.dot_dimension_numbers<[0], [0], [1], [1], [0, 1, 1, 1], [], []>} : vector<256x256xbf16>, vector<256x128xbf16>, vector<256x128xf32> -> vector<256x128xf32>
      %52 = arith.index_cast %43 : i32 to index
      %c0_24 = arith.constant 0 : index
      %53 = vector.load %arg10[%52, %c0_24] : memref<256x128xf32, #tpu.memory_space<vmem>>, vector<256x128xf32>
      %54 = arith.addf %53, %51 : vector<256x128xf32>
      %55 = arith.index_cast %43 : i32 to index
      %c0_25 = arith.constant 0 : index
      %56 = vector.load %arg10[%55, %c0_25] : memref<256x128xf32, #tpu.memory_space<vmem>>, vector<256x128xf32>
      tpu.vector_store %arg10[%55, %c0_25], %54 {strides = array<i32>} : memref<256x128xf32, #tpu.memory_space<vmem>>, vector<256x128xf32>,
    }
    return
  }
  func.func @transform_0(%arg0: i32, %arg1: memref<2xi32, #tpu.memory_space<smem>>, %arg2: memref<2xi32, #tpu.memory_space<smem>>) -> (i32, i32) {
    %c0_i32 = arith.constant 0 : i32
    %c0_i32_0 = arith.constant 0 : i32
    return %arg0, %c0_i32 : i32, i32
  }
  func.func @transform_1(%arg0: i32, %arg1: memref<2xi32, #tpu.memory_space<smem>>, %arg2: memref<2xi32, #tpu.memory_space<smem>>) -> (i32, i32) {
    %c0_i32 = arith.constant 0 : i32
    %c0_i32_0 = arith.constant 0 : i32
    return %arg0, %c0_i32 : i32, i32
  }
  func.func @transform_2(%arg0: i32, %arg1: memref<2xi32, #tpu.memory_space<smem>>, %arg2: memref<2xi32, #tpu.memory_space<smem>>) -> (i32, i32) {
    %c0_i32 = arith.constant 0 : i32
    %c0_i32_0 = arith.constant 0 : i32
    %c0_i32_1 = arith.constant 0 : i32
    return %c0_i32, %c0_i32_0 : i32, i32
  }
  func.func @transform_3(%arg0: i32, %arg1: memref<2xi32, #tpu.memory_space<smem>>, %arg2: memref<2xi32, #tpu.memory_space<smem>>) -> (i32, i32) {
    %c0_i32 = arith.constant 0 : i32
    %c0_i32_0 = arith.constant 0 : i32
    %c0_i32_1 = arith.constant 0 : i32
    return %c0_i32, %c0_i32_0 : i32, i32
  }
  func.func @transform_4(%arg0: i32, %arg1: memref<2xi32, #tpu.memory_space<smem>>, %arg2: memref<2xi32, #tpu.memory_space<smem>>) -> (i32, i32) {
    %c0_i32 = arith.constant 0 : i32
    %c0_i32_0 = arith.constant 0 : i32
    %c0_i32_1 = arith.constant 0 : i32
    return %c0_i32, %c0_i32_0 : i32, i32
  }
  func.func @transform_5(%arg0: i32, %arg1: memref<2xi32, #tpu.memory_space<smem>>, %arg2: memref<2xi32, #tpu.memory_space<smem>>) -> (i32, i32) {
    %c0_i32 = arith.constant 0 : i32
    %c0_i32_0 = arith.constant 0 : i32
    %c0_i32_1 = arith.constant 0 : i32
    return %c0_i32, %c0_i32_0 : i32, i32
  }
  func.func @transform_6(%arg0: i32, %arg1: memref<2xi32, #tpu.memory_space<smem>>, %arg2: memref<2xi32, #tpu.memory_space<smem>>) -> (i32, i32) {
    %c0_i32 = arith.constant 0 : i32
    %c0_i32_0 = arith.constant 0 : i32
    %c0_i32_1 = arith.constant 0 : i32
    return %c0_i32, %c0_i32_0 : i32, i32
  }
  func.func @transform_7(%arg0: i32, %arg1: memref<2xi32, #tpu.memory_space<smem>>, %arg2: memref<2xi32, #tpu.memory_space<smem>>) -> (i32, i32) {
    %c0_i32 = arith.constant 0 : i32
    %c0_i32_0 = arith.constant 0 : i32
    %c0_i32_1 = arith.constant 0 : i32
    return %c0_i32, %c0_i32_0 : i32, i32
  }
  func.func @transform_8(%arg0: i32, %arg1: memref<2xi32, #tpu.memory_space<smem>>, %arg2: memref<2xi32, #tpu.memory_space<smem>>) -> (i32, i32) {
    %c0_i32 = arith.constant 0 : i32
    %c0_i32_0 = arith.constant 0 : i32
    return %c0_i32, %arg0 : i32, i32
  }
}

</mosaic_0001>

<llo_original>
// kernel: tpu_custom_call.1
$region0: #{tpu_custom_call.1}
  #allocation0 [shape = 'u32[]', space=smem, size = 0x4, offset = 0x4, fixed_abs, tag = 'smem constant byte address 0x4 - core index']
  #allocation1 [shape = 'u32[144,128]{1,0:T(1,128)}', space=vmem, size = 0x12000, scoped, tag = 'internal scratch']
  #allocation2 [shape = 's32[1]{0}', space=sflag, size = 0x4, scoped, tag = 'scoped memory for tpu_custom_call.1']
  #allocation3 [shape = 'u8[512]{0}', space=smem, size = 0x200, scoped, tag = 'prefetched SMEM operand 0']
  #allocation4 [shape = 'u8[512]{0}', space=smem, size = 0x200, scoped, tag = 'prefetched SMEM operand 1']
  #allocation5 [shape = 'f32[1,1]{1,0:T(1,128)S(6)}', space=smem, size = 0x200, scoped, tag = 'scoped memory for tpu_custom_call.1']
  %s0 = inlined_call_operand.vmem [shape: s32[2], index: 0, kind: input, shape index: {}]
  %s1 = inlined_call_operand.vmem [shape: s32[2], index: 1, kind: input, shape index: {}]
  %s2 = inlined_call_operand.vmem [shape: f32[512,128], index: 2, kind: input, shape index: {}]
  %s3 = inlined_call_operand.vmem [shape: s32[512,1], index: 3, kind: input, shape index: {}]
  %s4 = inlined_call_operand.hbm [shape: f32[128,128], index: 4, kind: input, shape index: {}]
  %s5 = inlined_call_operand.hbm [shape: f32[128,128], index: 5, kind: input, shape index: {}]
  %s6 = inlined_call_operand.vmem [shape: f32[1,128], index: 6, kind: input, shape index: {}]
  %s7 = inlined_call_operand.<no memory space> [shape: f32[1,1], index: 7, kind: input, shape index: {}]
  %s8 = inlined_call_operand.hbm [shape: f32[128,128], index: 8, kind: input, shape index: {}]
  %s9 = inlined_call_operand.hbm [shape: f32[256,128], index: 9, kind: output, shape index: {0}]
  %s10 = inlined_call_operand.hbm [shape: f32[1,512], index: 10, kind: output, shape index: {1}]
  %11 = xla_tuple %s9, %s10
  %s12 = sld [smem:[#allocation0]]
  $region92: #{tpu_custom_call.1} parent=0
    _
  %s14 = ssub.s32 1, %s12
  %s15 = scalar_select 0, %s14, %s12
  %s16 = sshll.u32 %s0, 4
  %s17 = int_to_ptr.vmem [resolvable:$true] %s16
  %19 = dma.vmem_to_smem %s17, 16, [#allocation3], [#allocation2]
  %s20 = sshll.u32 %s1, 4
  %s21 = int_to_ptr.vmem [resolvable:$true] %s20
  %23 = dma.vmem_to_smem %s21, 16, [#allocation4], [#allocation2]
  %24 = sst [smem:[#allocation5]] %s7
  %25 = dma.done [#allocation2], 32
  %26 = sfence
  $region1: #{tpu_custom_call.1} parent=0
    #allocation6 [shape = 'u8[65536]{0}', space=vmem, size = 0x10000, scoped, tag = 'input window, operand 4, single buffered']
    #allocation7 [shape = 's32[2]{0}', space=sflag, size = 0x8, scoped, tag = 'scoped memory for tpu_custom_call.1']
    #allocation8 [shape = 's32[2]{0}', space=sflag, size = 0x8, scoped, tag = 'scoped memory for tpu_custom_call.1']
    #allocation9 [shape = 'u8[65536]{0}', space=vmem, size = 0x10000, scoped, tag = 'input window, operand 5, single buffered']
    #allocation10 [shape = 's32[1]{0}', space=sflag, size = 0x4, scoped, tag = 'scoped memory for tpu_custom_call.1']
    #allocation11 [shape = 'u8[65536]{0}', space=vmem, size = 0x10000, scoped, tag = 'input window, operand 8, single buffered']
    #allocation12 [shape = 'u8[131072]{0}', space=vmem, size = 0x20000, scoped, tag = 'output window, operand 0, single buffered']
    #allocation13 [shape = 'u8[2048]{0}', space=vmem, size = 0x800, scoped, tag = 'output window, operand 1']
    #allocation14 [shape = 's32[2]{0}', space=sflag, size = 0x8, scoped, tag = 'scoped memory for tpu_custom_call.1']
    %27 = vsyncpa [#allocation7], 0
    %28 = vsyncpa [#allocation10], 0
    %29 = vsyncpa [#allocation8], 0
    %30 = vsyncpa [#allocation14], 0
    %s31 = scalar_lea.sflag [#allocation14], 1
    %32 = vsyncpa %s31, 0
    loop: start=0, step=1, limit=4
    $region2: #{tpu_custom_call.1} parent=1 // loop_pre_header
      _
    $region3: #{tpu_custom_call.1} parent=1 // loop_header
      %s34 = sphi 0, %s38
      %p35 = scmp.ge.s32.totalorder %s34, 4
      %s44 = sphi 0, %s46
      %s47 = sphi 0, %s44
      %s48 = sphi 0, %s47
      %s64 = sphi 0, %s48
      %s70 = sphi 0, %s72
      %s73 = sphi 0, %s70
      %s74 = sphi 0, %s73
      %s90 = sphi 0, %s74
      %s94 = sphi 0, %s94
      %s96 = sphi 0, %s94
      %s97 = sphi 0, %s96
      %s111 = sphi 0, %s97
      %s115 = sphi 0, %s115
      %s117 = sphi 0, %s115
      %s118 = sphi 0, %s117
      %s132 = sphi 0, %s118
      %s136 = sphi 0, %s136
      %s138 = sphi 0, %s136
      %s139 = sphi 0, %s138
      %s153 = sphi 0, %s139
      %s157 = sphi 0, %s157
      %s159 = sphi 0, %s157
      %s160 = sphi 0, %s159
      %s174 = sphi 0, %s160
      %s178 = sphi 0, %s178
      %s180 = sphi 0, %s178
      %s181 = sphi 0, %s180
      %s195 = sphi 0, %s181
      %s199 = sphi 0, %s199
      %s201 = sphi 0, %s199
      %s202 = sphi 0, %s201
      %s216 = sphi 0, %s202
      %s222 = sphi 0, %s224
      %s225 = sphi 0, %s222
      %s226 = sphi 0, %s225
      %s242 = sphi 0, %s226
    $region4: #{tpu_custom_call.1} parent=1 // loop_header_branch
      %37 = sbr.rel (%p35) target = $region8
    $region5: #{tpu_custom_call.1} parent=1 // loop_body
      %s39 = ssub.s32 %s34, 1
      %s40 = ssub.s32 %s34, 2
      %s41 = sadd.s32 %s34, 1
      %s42 = ssub.s32 %s34, %s41
      %p43 = scmp.eq.s32.totalorder %s42, 0
      %s45 = sadd.s32 %s44, 1
      %s46 = scalar_select %p43, %s44, %s45
      %p49 = pneg %p43
      %p50 = scmp.eq.s32.totalorder %s34, 1
      %p51 = por %p49, %p50
      %p52 = scmp.ne.s32.totalorder %s44, %s47
      %p53 = scmp.eq.s32.totalorder %s34, 0
      %p54 = por %p52, %p53
      %p55 = scmp.ne.s32.totalorder %s44, %s47
      %p56 = scmp.eq.s32.totalorder %s39, 1
      %p57 = por %p55, %p56
      %p58 = scmp.ne.s32.totalorder %s47, %s48
      %p59 = scmp.eq.s32.totalorder %s39, 0
      %p60 = por %p58, %p59
      %p61 = scmp.ne.s32.totalorder %s47, %s48
      %p62 = scmp.eq.s32.totalorder %s40, 1
      %p63 = por %p61, %p62
      %p65 = scmp.ne.s32.totalorder %s48, %s64
      %p66 = scmp.eq.s32.totalorder %s40, 0
      %p67 = por %p65, %p66
      %s68 = ssub.s32 %s34, %s41
      %p69 = scmp.eq.s32.totalorder %s68, 0
      %s71 = sadd.s32 %s70, 1
      %s72 = scalar_select %p69, %s70, %s71
      %p75 = pneg %p69
      %p76 = scmp.eq.s32.totalorder %s34, 1
      %p77 = por %p75, %p76
      %p78 = scmp.ne.s32.totalorder %s70, %s73
      %p79 = scmp.eq.s32.totalorder %s34, 0
      %p80 = por %p78, %p79
      %p81 = scmp.ne.s32.totalorder %s70, %s73
      %p82 = scmp.eq.s32.totalorder %s39, 1
      %p83 = por %p81, %p82
      %p84 = scmp.ne.s32.totalorder %s73, %s74
      %p85 = scmp.eq.s32.totalorder %s39, 0
      %p86 = por %p84, %p85
      %p87 = scmp.ne.s32.totalorder %s73, %s74
      %p88 = scmp.eq.s32.totalorder %s40, 1
      %p89 = por %p87, %p88
      %p91 = scmp.ne.s32.totalorder %s74, %s90
      %p92 = scmp.eq.s32.totalorder %s40, 0
      %p93 = por %p91, %p92
      %s95 = sadd.s32 %s94, 1
      %p98 = scmp.eq.s32.totalorder %s34, 1
      %p99 = scmp.ne.s32.totalorder %s94, %s96
      %p100 = scmp.eq.s32.totalorder %s34, 0
      %p101 = por %p99, %p100
      %p102 = scmp.ne.s32.totalorder %s94, %s96
      %p103 = scmp.eq.s32.totalorder %s39, 1
      %p104 = por %p102, %p103
      %p105 = scmp.ne.s32.totalorder %s96, %s97
      %p106 = scmp.eq.s32.totalorder %s39, 0
      %p107 = por %p105, %p106
      %p108 = scmp.ne.s32.totalorder %s96, %s97
      %p109 = scmp.eq.s32.totalorder %s40, 1
      %p110 = por %p108, %p109
      %p112 = scmp.ne.s32.totalorder %s97, %s111
      %p113 = scmp.eq.s32.totalorder %s40, 0
      %p114 = por %p112, %p113
      %s116 = sadd.s32 %s115, 1
      %p119 = scmp.eq.s32.totalorder %s34, 1
      %p120 = scmp.ne.s32.totalorder %s115, %s117
      %p121 = scmp.eq.s32.totalorder %s34, 0
      %p122 = por %p120, %p121
      %p123 = scmp.ne.s32.totalorder %s115, %s117
      %p124 = scmp.eq.s32.totalorder %s39, 1
      %p125 = por %p123, %p124
      %p126 = scmp.ne.s32.totalorder %s117, %s118
      %p127 = scmp.eq.s32.totalorder %s39, 0
      %p128 = por %p126, %p127
      %p129 = scmp.ne.s32.totalorder %s117, %s118
      %p130 = scmp.eq.s32.totalorder %s40, 1
      %p131 = por %p129, %p130
      %p133 = scmp.ne.s32.totalorder %s118, %s132
      %p134 = scmp.eq.s32.totalorder %s40, 0
      %p135 = por %p133, %p134
      %s137 = sadd.s32 %s136, 1
      %p140 = scmp.eq.s32.totalorder %s34, 1
      %p141 = scmp.ne.s32.totalorder %s136, %s138
      %p142 = scmp.eq.s32.totalorder %s34, 0
      %p143 = por %p141, %p142
      %p144 = scmp.ne.s32.totalorder %s136, %s138
      %p145 = scmp.eq.s32.totalorder %s39, 1
      %p146 = por %p144, %p145
      %p147 = scmp.ne.s32.totalorder %s138, %s139
      %p148 = scmp.eq.s32.totalorder %s39, 0
      %p149 = por %p147, %p148
      %p150 = scmp.ne.s32.totalorder %s138, %s139
      %p151 = scmp.eq.s32.totalorder %s40, 1
      %p152 = por %p150, %p151
      %p154 = scmp.ne.s32.totalorder %s139, %s153
      %p155 = scmp.eq.s32.totalorder %s40, 0
      %p156 = por %p154, %p155
      %s158 = sadd.s32 %s157, 1
      %p161 = scmp.eq.s32.totalorder %s34, 1
      %p162 = scmp.ne.s32.totalorder %s157, %s159
      %p163 = scmp.eq.s32.totalorder %s34, 0
      %p164 = por %p162, %p163
      %p165 = scmp.ne.s32.totalorder %s157, %s159
      %p166 = scmp.eq.s32.totalorder %s39, 1
      %p167 = por %p165, %p166
      %p168 = scmp.ne.s32.totalorder %s159, %s160
      %p169 = scmp.eq.s32.totalorder %s39, 0
      %p170 = por %p168, %p169
      %p171 = scmp.ne.s32.totalorder %s159, %s160
      %p172 = scmp.eq.s32.totalorder %s40, 1
      %p173 = por %p171, %p172
      %p175 = scmp.ne.s32.totalorder %s160, %s174
      %p176 = scmp.eq.s32.totalorder %s40, 0
      %p177 = por %p175, %p176
      %s179 = sadd.s32 %s178, 1
      %p182 = scmp.eq.s32.totalorder %s34, 1
      %p183 = scmp.ne.s32.totalorder %s178, %s180
      %p184 = scmp.eq.s32.totalorder %s34, 0
      %p185 = por %p183, %p184
      %p186 = scmp.ne.s32.totalorder %s178, %s180
      %p187 = scmp.eq.s32.totalorder %s39, 1
      %p188 = por %p186, %p187
      %p189 = scmp.ne.s32.totalorder %s180, %s181
      %p190 = scmp.eq.s32.totalorder %s39, 0
      %p191 = por %p189, %p190
      %p192 = scmp.ne.s32.totalorder %s180, %s181
      %p193 = scmp.eq.s32.totalorder %s40, 1
      %p194 = por %p192, %p193
      %p196 = scmp.ne.s32.totalorder %s181, %s195
      %p197 = scmp.eq.s32.totalorder %s40, 0
      %p198 = por %p196, %p197
      %s200 = sadd.s32 %s199, 1
      %p203 = scmp.eq.s32.totalorder %s34, 1
      %p204 = scmp.ne.s32.totalorder %s199, %s201
      %p205 = scmp.eq.s32.totalorder %s34, 0
      %p206 = por %p204, %p205
      %p207 = scmp.ne.s32.totalorder %s199, %s201
      %p208 = scmp.eq.s32.totalorder %s39, 1
      %p209 = por %p207, %p208
      %p210 = scmp.ne.s32.totalorder %s201, %s202
      %p211 = scmp.eq.s32.totalorder %s39, 0
      %p212 = por %p210, %p211
      %p213 = scmp.ne.s32.totalorder %s201, %s202
      %p214 = scmp.eq.s32.totalorder %s40, 1
      %p215 = por %p213, %p214
      %p217 = scmp.ne.s32.totalorder %s202, %s216
      %p218 = scmp.eq.s32.totalorder %s40, 0
      %p219 = por %p217, %p218
      %s220 = ssub.s32 %s34, %s41
      %p221 = scmp.eq.s32.totalorder %s220, 0
      %s223 = sadd.s32 %s222, 1
      %s224 = scalar_select %p221, %s222, %s223
      %p227 = pneg %p221
      %p228 = scmp.eq.s32.totalorder %s34, 1
      %p229 = por %p227, %p228
      %p230 = scmp.ne.s32.totalorder %s222, %s225
      %p231 = scmp.eq.s32.totalorder %s34, 0
      %p232 = por %p230, %p231
      %p233 = scmp.ne.s32.totalorder %s222, %s225
      %p234 = scmp.eq.s32.totalorder %s39, 1
      %p235 = por %p233, %p234
      %p236 = scmp.ne.s32.totalorder %s225, %s226
      %p237 = scmp.eq.s32.totalorder %s39, 0
      %p238 = por %p236, %p237
      %p239 = scmp.ne.s32.totalorder %s225, %s226
      %p240 = scmp.eq.s32.totalorder %s40, 1
      %p241 = por %p239, %p240
      %p243 = scmp.ne.s32.totalorder %s226, %s242
      %p244 = scmp.eq.s32.totalorder %s40, 0
      %p245 = por %p243, %p244
      %p246 = scmp.le.s32.totalorder 1, %s34
      %p247 = scmp.lt.s32.totalorder %s34, 3
      %p248 = pnand %p246, %p247
      %p249 = pneg %p248
      // Predicated region
      $region9: #{tpu_custom_call.1} parent=5 // pred_check
        _
      $region10: #{tpu_custom_call.1} parent=5 // pred_check_branch
        %251 = sbr.rel (%p248) target = $region12
      $region11: #{tpu_custom_call.1} parent=5 // pred_region
        %s252 = ssub.s32 %s34, 1
        // Predicated region
        $region13: #{tpu_custom_call.1} parent=11 // pred_check
          %p253 = pneg %p107
        $region14: #{tpu_custom_call.1} parent=11 // pred_check_branch
          %255 = sbr.rel (%p253) target = $region16
        $region15: #{tpu_custom_call.1} parent=11 // pred_region
          %s257 = ssub.s32 2048, 2048
          %258 = vsyncadd [#allocation7], %s257
          %s259 = sshll.u32 [#allocation6], 4
          %s260 = int_to_ptr.vmem [resolvable:$true] %s259
          %265 = dma.hbm_to_vmem [thread:$0]  %s4, 2048, %s260, [#allocation7], 128, 128, 8
        $region16: #{tpu_custom_call.1} parent=11 // pred_fallthru
          _
        // Predicated region
        $region17: #{tpu_custom_call.1} parent=11 // pred_check
          %p266 = pneg %p128
        $region18: #{tpu_custom_call.1} parent=11 // pred_check_branch
          %268 = sbr.rel (%p266) target = $region20
        $region19: #{tpu_custom_call.1} parent=11 // pred_region
          %s270 = ssub.s32 2048, 2048
          %271 = vsyncadd [#allocation10], %s270
          %s272 = sshll.u32 [#allocation9], 4
          %s273 = int_to_ptr.vmem [resolvable:$true] %s272
          %278 = dma.hbm_to_vmem [thread:$0]  %s5, 2048, %s273, [#allocation10], 128, 128, 8
        $region20: #{tpu_custom_call.1} parent=11 // pred_fallthru
          _
        // Predicated region
        $region21: #{tpu_custom_call.1} parent=11 // pred_check
          %p279 = pneg %p149
        $region22: #{tpu_custom_call.1} parent=11 // pred_check_branch
          %281 = sbr.rel (%p279) target = $region24
        $region23: #{tpu_custom_call.1} parent=11 // pred_region
          _
        $region24: #{tpu_custom_call.1} parent=11 // pred_fallthru
          _
        // Predicated region
        $region25: #{tpu_custom_call.1} parent=11 // pred_check
          %p282 = pneg %p170
        $region26: #{tpu_custom_call.1} parent=11 // pred_check_branch
          %284 = sbr.rel (%p282) target = $region28
        $region27: #{tpu_custom_call.1} parent=11 // pred_region
          _
        $region28: #{tpu_custom_call.1} parent=11 // pred_fallthru
          _
        // Predicated region
        $region29: #{tpu_custom_call.1} parent=11 // pred_check
          %p285 = pneg %p191
        $region30: #{tpu_custom_call.1} parent=11 // pred_check_branch
          %287 = sbr.rel (%p285) target = $region32
        $region31: #{tpu_custom_call.1} parent=11 // pred_region
          %s289 = ssub.s32 2048, 2048
          %290 = vsyncadd [#allocation10], %s289
          %s291 = sshll.u32 [#allocation11], 4
          %s292 = int_to_ptr.vmem [resolvable:$true] %s291
          %297 = dma.hbm_to_vmem [thread:$0]  %s8, 2048, %s292, [#allocation10], 128, 128, 8
        $region32: #{tpu_custom_call.1} parent=11 // pred_fallthru
          _
      $region12: #{tpu_custom_call.1} parent=5 // pred_fallthru
        _
      %p298 = scmp.lt.s32.totalorder %s34, 2
      // Predicated region
      $region33: #{tpu_custom_call.1} parent=5 // pred_check
        %p299 = pneg %p298
      $region34: #{tpu_custom_call.1} parent=5 // pred_check_branch
        %301 = sbr.rel (%p299) target = $region36
      $region35: #{tpu_custom_call.1} parent=5 // pred_region
        // Predicated region
        $region37: #{tpu_custom_call.1} parent=35 // pred_check
          %p302 = pneg %p54
        $region38: #{tpu_custom_call.1} parent=35 // pred_check_branch
          %304 = sbr.rel (%p302) target = $region40
        $region39: #{tpu_custom_call.1} parent=35 // pred_region
          %s305 = smul.u32 32, %s34
          %p306 = scmp.lt.s32.totalorder %s305, 63
          %s307 = scalar_select %p306, %s305, 63
          %s308 = smul.addr %s307, 8
          %s309 = scalar_lea.vmem %s2, %s308
          %s310 = smul.u32 32, %s34
        $region40: #{tpu_custom_call.1} parent=35 // pred_fallthru
          _
        // Predicated region
        $region41: #{tpu_custom_call.1} parent=35 // pred_check
          %p311 = pneg %p80
        $region42: #{tpu_custom_call.1} parent=35 // pred_check_branch
          %313 = sbr.rel (%p311) target = $region44
        $region43: #{tpu_custom_call.1} parent=35 // pred_region
          %s314 = smul.u32 32, %s34
          %p315 = scmp.lt.s32.totalorder %s314, 63
          %s316 = scalar_select %p315, %s314, 63
          %s317 = smul.addr %s316, 8
          %s318 = scalar_lea.vmem %s3, %s317
          %s319 = smul.u32 32, %s34
        $region44: #{tpu_custom_call.1} parent=35 // pred_fallthru
          _
      $region36: #{tpu_custom_call.1} parent=5 // pred_fallthru
        _
      %p320 = scmp.le.s32.totalorder 1, %s34
      %p321 = scmp.lt.s32.totalorder %s34, 3
      %p322 = pnand %p320, %p321
      %p323 = pneg %p322
      // Predicated region
      $region45: #{tpu_custom_call.1} parent=5 // pred_check
        _
      $region46: #{tpu_custom_call.1} parent=5 // pred_check_branch
        %325 = sbr.rel (%p322) target = $region48
      $region47: #{tpu_custom_call.1} parent=5 // pred_region
        %s326 = ssub.s32 %s34, 1
        // Predicated region
        $region49: #{tpu_custom_call.1} parent=47 // pred_check
          %p327 = pneg %p107
        $region50: #{tpu_custom_call.1} parent=47 // pred_check_branch
          %329 = sbr.rel (%p327) target = $region52
        $region51: #{tpu_custom_call.1} parent=47 // pred_region
          %330 = dma.done [#allocation7], 2048
        $region52: #{tpu_custom_call.1} parent=47 // pred_fallthru
          _
        // Predicated region
        $region53: #{tpu_custom_call.1} parent=47 // pred_check
          %p331 = pneg %p128
        $region54: #{tpu_custom_call.1} parent=47 // pred_check_branch
          %333 = sbr.rel (%p331) target = $region56
        $region55: #{tpu_custom_call.1} parent=47 // pred_region
          %334 = dma.done [#allocation10], 2048
        $region56: #{tpu_custom_call.1} parent=47 // pred_fallthru
          _
        // Predicated region
        $region57: #{tpu_custom_call.1} parent=47 // pred_check
          %p335 = pneg %p191
        $region58: #{tpu_custom_call.1} parent=47 // pred_check_branch
          %337 = sbr.rel (%p335) target = $region60
        $region59: #{tpu_custom_call.1} parent=47 // pred_region
          %338 = dma.done [#allocation10], 2048
        $region60: #{tpu_custom_call.1} parent=47 // pred_fallthru
          _
        %s339 = smul.u32 32, %s39
        %p340 = scmp.lt.s32.totalorder %s339, 63
        %s341 = scalar_select %p340, %s339, 63
        %s342 = smul.addr %s341, 8
        %s343 = scalar_lea.vmem %s2, %s342
        %p344 = pneg %p60
        %p345 = pneg %p57
        %s346 = smul.u32 32, %s39
        %p347 = scmp.lt.s32.totalorder %s346, 63
        %s348 = scalar_select %p347, %s346, 63
        %s349 = smul.addr %s348, 8
        %s350 = scalar_lea.vmem %s3, %s349
        %p351 = pneg %p86
        %p352 = pneg %p83
        %p353 = pneg %p107
        %p354 = pneg %p104
        %p355 = pneg %p128
        %p356 = pneg %p125
        %p357 = pneg %p149
        %p358 = pneg %p146
        %p359 = pneg %p170
        %p360 = pneg %p167
        %p361 = pneg %p191
        %p362 = pneg %p188
        %p363 = pneg %p212
        %p364 = pneg %p209
        %p365 = pneg %p238
        %p366 = pneg %p235
        %s367 = sand.u32 %s225, 1
        %s368 = scalar_lea.sflag [#allocation14], %s367
        %s369 = sand.u32 %s225, 1
        %s370 = smul.addr %s369, 2
        %s371 = scalar_lea.vmem [#allocation13], %s370
        %s372 = smul.u32 32, %s39
        %p373 = scmp.lt.s32.totalorder %s372, 63
        %s374 = scalar_select %p373, %s372, 63
        %s375 = smul.addr %s374, 8
        %s376 = scalar_lea.vmem %s2, %s375
        %s377 = smul.u32 32, %s39
        %s378 = smul.u32 32, %s39
        %p379 = scmp.lt.s32.totalorder %s378, 63
        %s380 = scalar_select %p379, %s378, 63
        %s381 = smul.addr %s380, 8
        %s382 = scalar_lea.vmem %s3, %s381
        %s383 = smul.u32 32, %s39
        %s384 = smul.u32 2, %s39
        %p386 = scmp.eq.s32.totalorder %s39, 0
        // Predicated region
        $region61: #{tpu_custom_call.1} parent=47 // pred_check
          %p387 = pneg %p386
        $region62: #{tpu_custom_call.1} parent=47 // pred_check_branch
          %389 = sbr.rel (%p387) target = $region64
        $region63: #{tpu_custom_call.1} parent=47 // pred_region
          %390 = vst [vmem:[#allocation12] sm:$0xff] 0.0
          %391 = vst [vmem:[#allocation12 + $0x8] sm:$0xff] 0.0
          %392 = vst [vmem:[#allocation12 + $0x10] sm:$0xff] 0.0
          %393 = vst [vmem:[#allocation12 + $0x18] sm:$0xff] 0.0
          %394 = vst [vmem:[#allocation12 + $0x20] sm:$0xff] 0.0
          %395 = vst [vmem:[#allocation12 + $0x28] sm:$0xff] 0.0
          %396 = vst [vmem:[#allocation12 + $0x30] sm:$0xff] 0.0
          %397 = vst [vmem:[#allocation12 + $0x38] sm:$0xff] 0.0
          %398 = vst [vmem:[#allocation12 + $0x40] sm:$0xff] 0.0
          %399 = vst [vmem:[#allocation12 + $0x48] sm:$0xff] 0.0
          %400 = vst [vmem:[#allocation12 + $0x50] sm:$0xff] 0.0
          %401 = vst [vmem:[#allocation12 + $0x58] sm:$0xff] 0.0
          %402 = vst [vmem:[#allocation12 + $0x60] sm:$0xff] 0.0
          %403 = vst [vmem:[#allocation12 + $0x68] sm:$0xff] 0.0
          %404 = vst [vmem:[#allocation12 + $0x70] sm:$0xff] 0.0
          %405 = vst [vmem:[#allocation12 + $0x78] sm:$0xff] 0.0
          %406 = vst [vmem:[#allocation12 + $0x80] sm:$0xff] 0.0
          %407 = vst [vmem:[#allocation12 + $0x88] sm:$0xff] 0.0
          %408 = vst [vmem:[#allocation12 + $0x90] sm:$0xff] 0.0
          %409 = vst [vmem:[#allocation12 + $0x98] sm:$0xff] 0.0
          %410 = vst [vmem:[#allocation12 + $0xa0] sm:$0xff] 0.0
          %411 = vst [vmem:[#allocation12 + $0xa8] sm:$0xff] 0.0
          %412 = vst [vmem:[#allocation12 + $0xb0] sm:$0xff] 0.0
          %413 = vst [vmem:[#allocation12 + $0xb8] sm:$0xff] 0.0
          %414 = vst [vmem:[#allocation12 + $0xc0] sm:$0xff] 0.0
          %415 = vst [vmem:[#allocation12 + $0xc8] sm:$0xff] 0.0
          %416 = vst [vmem:[#allocation12 + $0xd0] sm:$0xff] 0.0
          %417 = vst [vmem:[#allocation12 + $0xd8] sm:$0xff] 0.0
          %418 = vst [vmem:[#allocation12 + $0xe0] sm:$0xff] 0.0
          %419 = vst [vmem:[#allocation12 + $0xe8] sm:$0xff] 0.0
          %420 = vst [vmem:[#allocation12 + $0xf0] sm:$0xff] 0.0
          %421 = vst [vmem:[#allocation12 + $0xf8] sm:$0xff] 0.0
        $region64: #{tpu_custom_call.1} parent=47 // pred_fallthru
          _
        %v422 = vld [vmem:[%s376] sm:$0xff]
        %v423 = vld [vmem:[%s376 + $0x8] sm:$0xff]
        %v424 = vld [vmem:[%s376 + $0x10] sm:$0xff]
        %v425 = vld [vmem:[%s376 + $0x18] sm:$0xff]
        %v426 = vld [vmem:[%s376 + $0x20] sm:$0xff]
        %v427 = vld [vmem:[%s376 + $0x28] sm:$0xff]
        %v428 = vld [vmem:[%s376 + $0x30] sm:$0xff]
        %v429 = vld [vmem:[%s376 + $0x38] sm:$0xff]
        %v430 = vld [vmem:[%s376 + $0x40] sm:$0xff]
        %v431 = vld [vmem:[%s376 + $0x48] sm:$0xff]
        %v432 = vld [vmem:[%s376 + $0x50] sm:$0xff]
        %v433 = vld [vmem:[%s376 + $0x58] sm:$0xff]
        %v434 = vld [vmem:[%s376 + $0x60] sm:$0xff]
        %v435 = vld [vmem:[%s376 + $0x68] sm:$0xff]
        %v436 = vld [vmem:[%s376 + $0x70] sm:$0xff]
        %v437 = vld [vmem:[%s376 + $0x78] sm:$0xff]
        %v438 = vld [vmem:[%s376 + $0x80] sm:$0xff]
        %v439 = vld [vmem:[%s376 + $0x88] sm:$0xff]
        %v440 = vld [vmem:[%s376 + $0x90] sm:$0xff]
        %v441 = vld [vmem:[%s376 + $0x98] sm:$0xff]
        %v442 = vld [vmem:[%s376 + $0xa0] sm:$0xff]
        %v443 = vld [vmem:[%s376 + $0xa8] sm:$0xff]
        %v444 = vld [vmem:[%s376 + $0xb0] sm:$0xff]
        %v445 = vld [vmem:[%s376 + $0xb8] sm:$0xff]
        %v446 = vld [vmem:[%s376 + $0xc0] sm:$0xff]
        %v447 = vld [vmem:[%s376 + $0xc8] sm:$0xff]
        %v448 = vld [vmem:[%s376 + $0xd0] sm:$0xff]
        %v449 = vld [vmem:[%s376 + $0xd8] sm:$0xff]
        %v450 = vld [vmem:[%s376 + $0xe0] sm:$0xff]
        %v451 = vld [vmem:[%s376 + $0xe8] sm:$0xff]
        %v452 = vld [vmem:[%s376 + $0xf0] sm:$0xff]
        %v453 = vld [vmem:[%s376 + $0xf8] sm:$0xff]
        %v454 = vld [vmem:[#allocation6] sm:$0xff]
        %v455 = vld [vmem:[#allocation6 + $0x8] sm:$0xff]
        %v456 = vld [vmem:[#allocation6 + $0x10] sm:$0xff]
        %v457 = vld [vmem:[#allocation6 + $0x18] sm:$0xff]
        %v458 = vld [vmem:[#allocation6 + $0x20] sm:$0xff]
        %v459 = vld [vmem:[#allocation6 + $0x28] sm:$0xff]
        %v460 = vld [vmem:[#allocation6 + $0x30] sm:$0xff]
        %v461 = vld [vmem:[#allocation6 + $0x38] sm:$0xff]
        %v462 = vld [vmem:[#allocation6 + $0x40] sm:$0xff]
        %v463 = vld [vmem:[#allocation6 + $0x48] sm:$0xff]
        %v464 = vld [vmem:[#allocation6 + $0x50] sm:$0xff]
        %v465 = vld [vmem:[#allocation6 + $0x58] sm:$0xff]
        %v466 = vld [vmem:[#allocation6 + $0x60] sm:$0xff]
        %v467 = vld [vmem:[#allocation6 + $0x68] sm:$0xff]
        %v468 = vld [vmem:[#allocation6 + $0x70] sm:$0xff]
        %v469 = vld [vmem:[#allocation6 + $0x78] sm:$0xff]
        %470 = vmatprep.subr.mxu0 0.0
        %471 = vmatpush1.msra.mxu0 %v454
        %472 = vmatprep.subr.mxu0 0.0
        %473 = vmatpush1.msra.mxu0 %v455
        %474 = vmatprep.subr.mxu0 0.0
        %475 = vmatpush1.msra.mxu0 %v456
        %476 = vmatprep.subr.mxu0 0.0
        %477 = vmatpush1.msra.mxu0 %v457
        %478 = vmatprep.subr.mxu0 0.0
        %479 = vmatpush1.msra.mxu0 %v458
        %480 = vmatprep.subr.mxu0 0.0
        %481 = vmatpush1.msra.mxu0 %v459
        %482 = vmatprep.subr.mxu0 0.0
        %483 = vmatpush1.msra.mxu0 %v460
        %484 = vmatprep.subr.mxu0 0.0
        %485 = vmatpush1.msra.mxu0 %v461
        %486 = vmatprep.subr.mxu0 0.0
        %487 = vmatpush1.msra.mxu0 %v462
        %488 = vmatprep.subr.mxu0 0.0
        %489 = vmatpush1.msra.mxu0 %v463
        %490 = vmatprep.subr.mxu0 0.0
        %491 = vmatpush1.msra.mxu0 %v464
        %492 = vmatprep.subr.mxu0 0.0
        %493 = vmatpush1.msra.mxu0 %v465
        %494 = vmatprep.subr.mxu0 0.0
        %495 = vmatpush1.msra.mxu0 %v466
        %496 = vmatprep.subr.mxu0 0.0
        %497 = vmatpush1.msra.mxu0 %v467
        %498 = vmatprep.subr.mxu0 0.0
        %499 = vmatpush1.msra.mxu0 %v468
        %500 = vmatprep.subr.mxu0 0.0
        %501 = vmatpush1.msra.mxu0 %v469
        %502 = vmatprep.subr.mxu0 0.0
        %503 = vmatpush1.msra.mxu0 0.0
        %504 = vmatprep.subr.mxu0 0.0
        %505 = vmatpush1.msra.mxu0 0.0
        %506 = vmatprep.subr.mxu0 0.0
        %507 = vmatpush1.msra.mxu0 0.0
        %508 = vmatprep.subr.mxu0 0.0
        %509 = vmatpush1.msra.mxu0 0.0
        %510 = vmatprep.subr.mxu0 0.0
        %511 = vmatpush1.msra.mxu0 0.0
        %512 = vmatprep.subr.mxu0 0.0
        %513 = vmatpush1.msra.mxu0 0.0
        %514 = vmatprep.subr.mxu0 0.0
        %515 = vmatpush1.msra.mxu0 0.0
        %516 = vmatprep.subr.mxu0 0.0
        %517 = vmatpush1.msra.mxu0 0.0
        %518 = vmatprep.subr.mxu0 0.0
        %519 = vmatpush1.msra.mxu0 0.0
        %520 = vmatprep.subr.mxu0 0.0
        %521 = vmatpush1.msra.mxu0 0.0
        %522 = vmatprep.subr.mxu0 0.0
        %523 = vmatpush1.msra.mxu0 0.0
        %524 = vmatprep.subr.mxu0 0.0
        %525 = vmatpush1.msra.mxu0 0.0
        %526 = vmatprep.subr.mxu0 0.0
        %527 = vmatpush1.msra.mxu0 0.0
        %528 = vmatprep.subr.mxu0 0.0
        %529 = vmatpush1.msra.mxu0 0.0
        %530 = vmatprep.subr.mxu0 0.0
        %531 = vmatpush1.msra.mxu0 0.0
        %532 = vmatprep.subr.mxu0 0.0
        %533 = vmatpush1.msra.mxu0 0.0
        %534 = vmatprep.mubr.f32.mxu0 0.0
        %535 = vmatmul.mubr.f32.gmra.mrb[0].mxu0 %v422
        %v536 = vpop.f32.mrb[0].mxu0
        %v537 = vadd.f32 0.0, %v536
        %v538 = vpop.f32.mrb[0].mxu0
        %539 = vmatprep.mubr.f32.mxu0 0.0
        %540 = vmatmul.mubr.f32.gmra.mrb[0].mxu0 %v423
        %v541 = vpop.f32.mrb[0].mxu0
        %v542 = vadd.f32 0.0, %v541
        %v543 = vpop.f32.mrb[0].mxu0
        %544 = vmatprep.mubr.f32.mxu0 0.0
        %545 = vmatmul.mubr.f32.gmra.mrb[0].mxu0 %v424
        %v546 = vpop.f32.mrb[0].mxu0
        %v547 = vadd.f32 0.0, %v546
        %v548 = vpop.f32.mrb[0].mxu0
        %549 = vmatprep.mubr.f32.mxu0 0.0
        %550 = vmatmul.mubr.f32.gmra.mrb[0].mxu0 %v425
        %v551 = vpop.f32.mrb[0].mxu0
        %v552 = vadd.f32 0.0, %v551
        %v553 = vpop.f32.mrb[0].mxu0
        %554 = vmatprep.mubr.f32.mxu0 0.0
        %555 = vmatmul.mubr.f32.gmra.mrb[0].mxu0 %v426
        %v556 = vpop.f32.mrb[0].mxu0
        %v557 = vadd.f32 0.0, %v556
        %v558 = vpop.f32.mrb[0].mxu0
        %559 = vmatprep.mubr.f32.mxu0 0.0
        %560 = vmatmul.mubr.f32.gmra.mrb[0].mxu0 %v427
        %v561 = vpop.f32.mrb[0].mxu0
        %v562 = vadd.f32 0.0, %v561
        %v563 = vpop.f32.mrb[0].mxu0
        %564 = vmatprep.mubr.f32.mxu0 0.0
        %565 = vmatmul.mubr.f32.gmra.mrb[0].mxu0 %v428
        %v566 = vpop.f32.mrb[0].mxu0
        %v567 = vadd.f32 0.0, %v566
        %v568 = vpop.f32.mrb[0].mxu0
        %569 = vmatprep.mubr.f32.mxu0 0.0
        %570 = vmatmul.mubr.f32.gmra.mrb[0].mxu0 %v429
        %v571 = vpop.f32.mrb[0].mxu0
        %v572 = vadd.f32 0.0, %v571
        %v573 = vpop.f32.mrb[0].mxu0
        %574 = vmatprep.mubr.f32.mxu0 0.0
        %575 = vmatmul.mubr.f32.gmra.mrb[0].mxu0 %v430
        %v576 = vpop.f32.mrb[0].mxu0
        %v577 = vadd.f32 0.0, %v576
        %v578 = vpop.f32.mrb[0].mxu0
        %579 = vmatprep.mubr.f32.mxu0 0.0
        %580 = vmatmul.mubr.f32.gmra.mrb[0].mxu0 %v431
        %v581 = vpop.f32.mrb[0].mxu0
        %v582 = vadd.f32 0.0, %v581
        %v583 = vpop.f32.mrb[0].mxu0
        %584 = vmatprep.mubr.f32.mxu0 0.0
        %585 = vmatmul.mubr.f32.gmra.mrb[0].mxu0 %v432
        %v586 = vpop.f32.mrb[0].mxu0
        %v587 = vadd.f32 0.0, %v586
        %v588 = vpop.f32.mrb[0].mxu0
        %589 = vmatprep.mubr.f32.mxu0 0.0
        %590 = vmatmul.mubr.f32.gmra.mrb[0].mxu0 %v433
        %v591 = vpop.f32.mrb[0].mxu0
        %v592 = vadd.f32 0.0, %v591
        %v593 = vpop.f32.mrb[0].mxu0
        %594 = vmatprep.mubr.f32.mxu0 0.0
        %595 = vmatmul.mubr.f32.gmra.mrb[0].mxu0 %v434
        %v596 = vpop.f32.mrb[0].mxu0
        %v597 = vadd.f32 0.0, %v596
        %v598 = vpop.f32.mrb[0].mxu0
        %599 = vmatprep.mubr.f32.mxu0 0.0
        %600 = vmatmul.mubr.f32.gmra.mrb[0].mxu0 %v435
        %v601 = vpop.f32.mrb[0].mxu0
        %v602 = vadd.f32 0.0, %v601
        %v603 = vpop.f32.mrb[0].mxu0
        %604 = vmatprep.mubr.f32.mxu0 0.0
        %605 = vmatmul.mubr.f32.gmra.mrb[0].mxu0 %v436
        %v606 = vpop.f32.mrb[0].mxu0
        %v607 = vadd.f32 0.0, %v606
        %v608 = vpop.f32.mrb[0].mxu0
        %609 = vmatprep.mubr.f32.mxu0 0.0
        %610 = vmatmul.mubr.f32.gmra.mrb[0].mxu0 %v437
        %v611 = vpop.f32.mrb[0].mxu0
        %v612 = vadd.f32 0.0, %v611
        %v613 = vpop.f32.mrb[0].mxu0
        %614 = vmatprep.mubr.f32.mxu0 0.0
        %615 = vmatmul.mubr.f32.gmra.mrb[0].mxu0 %v438
        %v616 = vpop.f32.mrb[0].mxu0
        %v617 = vadd.f32 0.0, %v616
        %v618 = vpop.f32.mrb[0].mxu0
        %619 = vmatprep.mubr.f32.mxu0 0.0
        %620 = vmatmul.mubr.f32.gmra.mrb[0].mxu0 %v439
        %v621 = vpop.f32.mrb[0].mxu0
        %v622 = vadd.f32 0.0, %v621
        %v623 = vpop.f32.mrb[0].mxu0
        %624 = vmatprep.mubr.f32.mxu0 0.0
        %625 = vmatmul.mubr.f32.gmra.mrb[0].mxu0 %v440
        %v626 = vpop.f32.mrb[0].mxu0
        %v627 = vadd.f32 0.0, %v626
        %v628 = vpop.f32.mrb[0].mxu0
        %629 = vmatprep.mubr.f32.mxu0 0.0
        %630 = vmatmul.mubr.f32.gmra.mrb[0].mxu0 %v441
        %v631 = vpop.f32.mrb[0].mxu0
        %v632 = vadd.f32 0.0, %v631
        %v633 = vpop.f32.mrb[0].mxu0
        %634 = vmatprep.mubr.f32.mxu0 0.0
        %635 = vmatmul.mubr.f32.gmra.mrb[0].mxu0 %v442
        %v636 = vpop.f32.mrb[0].mxu0
        %v637 = vadd.f32 0.0, %v636
        %v638 = vpop.f32.mrb[0].mxu0
        %639 = vmatprep.mubr.f32.mxu0 0.0
        %640 = vmatmul.mubr.f32.gmra.mrb[0].mxu0 %v443
        %v641 = vpop.f32.mrb[0].mxu0
        %v642 = vadd.f32 0.0, %v641
        %v643 = vpop.f32.mrb[0].mxu0
        %644 = vmatprep.mubr.f32.mxu0 0.0
        %645 = vmatmul.mubr.f32.gmra.mrb[0].mxu0 %v444
        %v646 = vpop.f32.mrb[0].mxu0
        %v647 = vadd.f32 0.0, %v646
        %v648 = vpop.f32.mrb[0].mxu0
        %649 = vmatprep.mubr.f32.mxu0 0.0
        %650 = vmatmul.mubr.f32.gmra.mrb[0].mxu0 %v445
        %v651 = vpop.f32.mrb[0].mxu0
        %v652 = vadd.f32 0.0, %v651
        %v653 = vpop.f32.mrb[0].mxu0
        %654 = vmatprep.mubr.f32.mxu0 0.0
        %655 = vmatmul.mubr.f32.gmra.mrb[0].mxu0 %v446
        %v656 = vpop.f32.mrb[0].mxu0
        %v657 = vadd.f32 0.0, %v656
        %v658 = vpop.f32.mrb[0].mxu0
        %659 = vmatprep.mubr.f32.mxu0 0.0
        %660 = vmatmul.mubr.f32.gmra.mrb[0].mxu0 %v447
        %v661 = vpop.f32.mrb[0].mxu0
        %v662 = vadd.f32 0.0, %v661
        %v663 = vpop.f32.mrb[0].mxu0
        %664 = vmatprep.mubr.f32.mxu0 0.0
        %665 = vmatmul.mubr.f32.gmra.mrb[0].mxu0 %v448
        %v666 = vpop.f32.mrb[0].mxu0
        %v667 = vadd.f32 0.0, %v666
        %v668 = vpop.f32.mrb[0].mxu0
        %669 = vmatprep.mubr.f32.mxu0 0.0
        %670 = vmatmul.mubr.f32.gmra.mrb[0].mxu0 %v449
        %v671 = vpop.f32.mrb[0].mxu0
        %v672 = vadd.f32 0.0, %v671
        %v673 = vpop.f32.mrb[0].mxu0
        %674 = vmatprep.mubr.f32.mxu0 0.0
        %675 = vmatmul.mubr.f32.gmra.mrb[0].mxu0 %v450
        %v676 = vpop.f32.mrb[0].mxu0
        %v677 = vadd.f32 0.0, %v676
        %v678 = vpop.f32.mrb[0].mxu0
        %679 = vmatprep.mubr.f32.mxu0 0.0
        %680 = vmatmul.mubr.f32.gmra.mrb[0].mxu0 %v451
        %v681 = vpop.f32.mrb[0].mxu0
        %v682 = vadd.f32 0.0, %v681
        %v683 = vpop.f32.mrb[0].mxu0
        %684 = vmatprep.mubr.f32.mxu0 0.0
        %685 = vmatmul.mubr.f32.gmra.mrb[0].mxu0 %v452
        %v686 = vpop.f32.mrb[0].mxu0
        %v687 = vadd.f32 0.0, %v686
        %v688 = vpop.f32.mrb[0].mxu0
        %689 = vmatprep.mubr.f32.mxu0 0.0
        %690 = vmatmul.mubr.f32.gmra.mrb[0].mxu0 %v453
        %v691 = vpop.f32.mrb[0].mxu0
        %v692 = vadd.f32 0.0, %v691
        %v693 = vpop.f32.mrb[0].mxu0
        %694 = vdwg.mxu0
        %v695 = vld [vmem:[#allocation9] sm:$0xff]
        %v696 = vld [vmem:[#allocation9 + $0x8] sm:$0xff]
        %v697 = vld [vmem:[#allocation9 + $0x10] sm:$0xff]
        %v698 = vld [vmem:[#allocation9 + $0x18] sm:$0xff]
        %v699 = vld [vmem:[#allocation9 + $0x20] sm:$0xff]
        %v700 = vld [vmem:[#allocation9 + $0x28] sm:$0xff]
        %v701 = vld [vmem:[#allocation9 + $0x30] sm:$0xff]
        %v702 = vld [vmem:[#allocation9 + $0x38] sm:$0xff]
        %v703 = vld [vmem:[#allocation9 + $0x40] sm:$0xff]
        %v704 = vld [vmem:[#allocation9 + $0x48] sm:$0xff]
        %v705 = vld [vmem:[#allocation9 + $0x50] sm:$0xff]
        %v706 = vld [vmem:[#allocation9 + $0x58] sm:$0xff]
        %v707 = vld [vmem:[#allocation9 + $0x60] sm:$0xff]
        %v708 = vld [vmem:[#allocation9 + $0x68] sm:$0xff]
        %v709 = vld [vmem:[#allocation9 + $0x70] sm:$0xff]
        %v710 = vld [vmem:[#allocation9 + $0x78] sm:$0xff]
        %711 = vmatprep.subr.mxu0 0.0
        %712 = vmatpush1.msra.mxu0 %v695
        %713 = vmatprep.subr.mxu0 0.0
        %714 = vmatpush1.msra.mxu0 %v696
        %715 = vmatprep.subr.mxu0 0.0
        %716 = vmatpush1.msra.mxu0 %v697
        %717 = vmatprep.subr.mxu0 0.0
        %718 = vmatpush1.msra.mxu0 %v698
        %719 = vmatprep.subr.mxu0 0.0
        %720 = vmatpush1.msra.mxu0 %v699
        %721 = vmatprep.subr.mxu0 0.0
        %722 = vmatpush1.msra.mxu0 %v700
        %723 = vmatprep.subr.mxu0 0.0
        %724 = vmatpush1.msra.mxu0 %v701
        %725 = vmatprep.subr.mxu0 0.0
        %726 = vmatpush1.msra.mxu0 %v702
        %727 = vmatprep.subr.mxu0 0.0
        %728 = vmatpush1.msra.mxu0 %v703
        %729 = vmatprep.subr.mxu0 0.0
        %730 = vmatpush1.msra.mxu0 %v704
        %731 = vmatprep.subr.mxu0 0.0
        %732 = vmatpush1.msra.mxu0 %v705
        %733 = vmatprep.subr.mxu0 0.0
        %734 = vmatpush1.msra.mxu0 %v706
        %735 = vmatprep.subr.mxu0 0.0
        %736 = vmatpush1.msra.mxu0 %v707
        %737 = vmatprep.subr.mxu0 0.0
        %738 = vmatpush1.msra.mxu0 %v708
        %739 = vmatprep.subr.mxu0 0.0
        %740 = vmatpush1.msra.mxu0 %v709
        %741 = vmatprep.subr.mxu0 0.0
        %742 = vmatpush1.msra.mxu0 %v710
        %743 = vmatprep.subr.mxu0 0.0
        %744 = vmatpush1.msra.mxu0 0.0
        %745 = vmatprep.subr.mxu0 0.0
        %746 = vmatpush1.msra.mxu0 0.0
        %747 = vmatprep.subr.mxu0 0.0
        %748 = vmatpush1.msra.mxu0 0.0
        %749 = vmatprep.subr.mxu0 0.0
        %750 = vmatpush1.msra.mxu0 0.0
        %751 = vmatprep.subr.mxu0 0.0
        %752 = vmatpush1.msra.mxu0 0.0
        %753 = vmatprep.subr.mxu0 0.0
        %754 = vmatpush1.msra.mxu0 0.0
        %755 = vmatprep.subr.mxu0 0.0
        %756 = vmatpush1.msra.mxu0 0.0
        %757 = vmatprep.subr.mxu0 0.0
        %758 = vmatpush1.msra.mxu0 0.0
        %759 = vmatprep.subr.mxu0 0.0
        %760 = vmatpush1.msra.mxu0 0.0
        %761 = vmatprep.subr.mxu0 0.0
        %762 = vmatpush1.msra.mxu0 0.0
        %763 = vmatprep.subr.mxu0 0.0
        %764 = vmatpush1.msra.mxu0 0.0
        %765 = vmatprep.subr.mxu0 0.0
        %766 = vmatpush1.msra.mxu0 0.0
        %767 = vmatprep.subr.mxu0 0.0
        %768 = vmatpush1.msra.mxu0 0.0
        %769 = vmatprep.subr.mxu0 0.0
        %770 = vmatpush1.msra.mxu0 0.0
        %771 = vmatprep.subr.mxu0 0.0
        %772 = vmatpush1.msra.mxu0 0.0
        %773 = vmatprep.subr.mxu0 0.0
        %774 = vmatpush1.msra.mxu0 0.0
        %775 = vmatprep.mubr.f32.mxu0 0.0
        %776 = vmatmul.mubr.f32.gmra.mrb[0].mxu0 %v537
        %v777 = vpop.f32.mrb[0].mxu0
        %v778 = vadd.f32 0.0, %v777
        %v779 = vpop.f32.mrb[0].mxu0
        %780 = vmatprep.mubr.f32.mxu0 0.0
        %781 = vmatmul.mubr.f32.gmra.mrb[0].mxu0 %v542
        %v782 = vpop.f32.mrb[0].mxu0
        %v783 = vadd.f32 0.0, %v782
        %v784 = vpop.f32.mrb[0].mxu0
        %785 = vmatprep.mubr.f32.mxu0 0.0
        %786 = vmatmul.mubr.f32.gmra.mrb[0].mxu0 %v547
        %v787 = vpop.f32.mrb[0].mxu0
        %v788 = vadd.f32 0.0, %v787
        %v789 = vpop.f32.mrb[0].mxu0
        %790 = vmatprep.mubr.f32.mxu0 0.0
        %791 = vmatmul.mubr.f32.gmra.mrb[0].mxu0 %v552
        %v792 = vpop.f32.mrb[0].mxu0
        %v793 = vadd.f32 0.0, %v792
        %v794 = vpop.f32.mrb[0].mxu0
        %795 = vmatprep.mubr.f32.mxu0 0.0
        %796 = vmatmul.mubr.f32.gmra.mrb[0].mxu0 %v557
        %v797 = vpop.f32.mrb[0].mxu0
        %v798 = vadd.f32 0.0, %v797
        %v799 = vpop.f32.mrb[0].mxu0
        %800 = vmatprep.mubr.f32.mxu0 0.0
        %801 = vmatmul.mubr.f32.gmra.mrb[0].mxu0 %v562
        %v802 = vpop.f32.mrb[0].mxu0
        %v803 = vadd.f32 0.0, %v802
        %v804 = vpop.f32.mrb[0].mxu0
        %805 = vmatprep.mubr.f32.mxu0 0.0
        %806 = vmatmul.mubr.f32.gmra.mrb[0].mxu0 %v567
        %v807 = vpop.f32.mrb[0].mxu0
        %v808 = vadd.f32 0.0, %v807
        %v809 = vpop.f32.mrb[0].mxu0
        %810 = vmatprep.mubr.f32.mxu0 0.0
        %811 = vmatmul.mubr.f32.gmra.mrb[0].mxu0 %v572
        %v812 = vpop.f32.mrb[0].mxu0
        %v813 = vadd.f32 0.0, %v812
        %v814 = vpop.f32.mrb[0].mxu0
        %815 = vmatprep.mubr.f32.mxu0 0.0
        %816 = vmatmul.mubr.f32.gmra.mrb[0].mxu0 %v577
        %v817 = vpop.f32.mrb[0].mxu0
        %v818 = vadd.f32 0.0, %v817
        %v819 = vpop.f32.mrb[0].mxu0
        %820 = vmatprep.mubr.f32.mxu0 0.0
        %821 = vmatmul.mubr.f32.gmra.mrb[0].mxu0 %v582
        %v822 = vpop.f32.mrb[0].mxu0
        %v823 = vadd.f32 0.0, %v822
        %v824 = vpop.f32.mrb[0].mxu0
        %825 = vmatprep.mubr.f32.mxu0 0.0
        %826 = vmatmul.mubr.f32.gmra.mrb[0].mxu0 %v587
        %v827 = vpop.f32.mrb[0].mxu0
        %v828 = vadd.f32 0.0, %v827
        %v829 = vpop.f32.mrb[0].mxu0
        %830 = vmatprep.mubr.f32.mxu0 0.0
        %831 = vmatmul.mubr.f32.gmra.mrb[0].mxu0 %v592
        %v832 = vpop.f32.mrb[0].mxu0
        %v833 = vadd.f32 0.0, %v832
        %v834 = vpop.f32.mrb[0].mxu0
        %835 = vmatprep.mubr.f32.mxu0 0.0
        %836 = vmatmul.mubr.f32.gmra.mrb[0].mxu0 %v597
        %v837 = vpop.f32.mrb[0].mxu0
        %v838 = vadd.f32 0.0, %v837
        %v839 = vpop.f32.mrb[0].mxu0
        %840 = vmatprep.mubr.f32.mxu0 0.0
        %841 = vmatmul.mubr.f32.gmra.mrb[0].mxu0 %v602
        %v842 = vpop.f32.mrb[0].mxu0
        %v843 = vadd.f32 0.0, %v842
        %v844 = vpop.f32.mrb[0].mxu0
        %845 = vmatprep.mubr.f32.mxu0 0.0
        %846 = vmatmul.mubr.f32.gmra.mrb[0].mxu0 %v607
        %v847 = vpop.f32.mrb[0].mxu0
        %v848 = vadd.f32 0.0, %v847
        %v849 = vpop.f32.mrb[0].mxu0
        %850 = vmatprep.mubr.f32.mxu0 0.0
        %851 = vmatmul.mubr.f32.gmra.mrb[0].mxu0 %v612
        %v852 = vpop.f32.mrb[0].mxu0
        %v853 = vadd.f32 0.0, %v852
        %v854 = vpop.f32.mrb[0].mxu0
        %855 = vmatprep.mubr.f32.mxu0 0.0
        %856 = vmatmul.mubr.f32.gmra.mrb[0].mxu0 %v617
        %v857 = vpop.f32.mrb[0].mxu0
        %v858 = vadd.f32 0.0, %v857
        %v859 = vpop.f32.mrb[0].mxu0
        %860 = vmatprep.mubr.f32.mxu0 0.0
        %861 = vmatmul.mubr.f32.gmra.mrb[0].mxu0 %v622
        %v862 = vpop.f32.mrb[0].mxu0
        %v863 = vadd.f32 0.0, %v862
        %v864 = vpop.f32.mrb[0].mxu0
        %865 = vmatprep.mubr.f32.mxu0 0.0
        %866 = vmatmul.mubr.f32.gmra.mrb[0].mxu0 %v627
        %v867 = vpop.f32.mrb[0].mxu0
        %v868 = vadd.f32 0.0, %v867
        %v869 = vpop.f32.mrb[0].mxu0
        %870 = vmatprep.mubr.f32.mxu0 0.0
        %871 = vmatmul.mubr.f32.gmra.mrb[0].mxu0 %v632
        %v872 = vpop.f32.mrb[0].mxu0
        %v873 = vadd.f32 0.0, %v872
        %v874 = vpop.f32.mrb[0].mxu0
        %875 = vmatprep.mubr.f32.mxu0 0.0
        %876 = vmatmul.mubr.f32.gmra.mrb[0].mxu0 %v637
        %v877 = vpop.f32.mrb[0].mxu0
        %v878 = vadd.f32 0.0, %v877
        %v879 = vpop.f32.mrb[0].mxu0
        %880 = vmatprep.mubr.f32.mxu0 0.0
        %881 = vmatmul.mubr.f32.gmra.mrb[0].mxu0 %v642
        %v882 = vpop.f32.mrb[0].mxu0
        %v883 = vadd.f32 0.0, %v882
        %v884 = vpop.f32.mrb[0].mxu0
        %885 = vmatprep.mubr.f32.mxu0 0.0
        %886 = vmatmul.mubr.f32.gmra.mrb[0].mxu0 %v647
        %v887 = vpop.f32.mrb[0].mxu0
        %v888 = vadd.f32 0.0, %v887
        %v889 = vpop.f32.mrb[0].mxu0
        %890 = vmatprep.mubr.f32.mxu0 0.0
        %891 = vmatmul.mubr.f32.gmra.mrb[0].mxu0 %v652
        %v892 = vpop.f32.mrb[0].mxu0
        %v893 = vadd.f32 0.0, %v892
        %v894 = vpop.f32.mrb[0].mxu0
        %895 = vmatprep.mubr.f32.mxu0 0.0
        %896 = vmatmul.mubr.f32.gmra.mrb[0].mxu0 %v657
        %v897 = vpop.f32.mrb[0].mxu0
        %v898 = vadd.f32 0.0, %v897
        %v899 = vpop.f32.mrb[0].mxu0
        %900 = vmatprep.mubr.f32.mxu0 0.0
        %901 = vmatmul.mubr.f32.gmra.mrb[0].mxu0 %v662
        %v902 = vpop.f32.mrb[0].mxu0
        %v903 = vadd.f32 0.0, %v902
        %v904 = vpop.f32.mrb[0].mxu0
        %905 = vmatprep.mubr.f32.mxu0 0.0
        %906 = vmatmul.mubr.f32.gmra.mrb[0].mxu0 %v667
        %v907 = vpop.f32.mrb[0].mxu0
        %v908 = vadd.f32 0.0, %v907
        %v909 = vpop.f32.mrb[0].mxu0
        %910 = vmatprep.mubr.f32.mxu0 0.0
        %911 = vmatmul.mubr.f32.gmra.mrb[0].mxu0 %v672
        %v912 = vpop.f32.mrb[0].mxu0
        %v913 = vadd.f32 0.0, %v912
        %v914 = vpop.f32.mrb[0].mxu0
        %915 = vmatprep.mubr.f32.mxu0 0.0
        %916 = vmatmul.mubr.f32.gmra.mrb[0].mxu0 %v677
        %v917 = vpop.f32.mrb[0].mxu0
        %v918 = vadd.f32 0.0, %v917
        %v919 = vpop.f32.mrb[0].mxu0
        %920 = vmatprep.mubr.f32.mxu0 0.0
        %921 = vmatmul.mubr.f32.gmra.mrb[0].mxu0 %v682
        %v922 = vpop.f32.mrb[0].mxu0
        %v923 = vadd.f32 0.0, %v922
        %v924 = vpop.f32.mrb[0].mxu0
        %925 = vmatprep.mubr.f32.mxu0 0.0
        %926 = vmatmul.mubr.f32.gmra.mrb[0].mxu0 %v687
        %v927 = vpop.f32.mrb[0].mxu0
        %v928 = vadd.f32 0.0, %v927
        %v929 = vpop.f32.mrb[0].mxu0
        %930 = vmatprep.mubr.f32.mxu0 0.0
        %931 = vmatmul.mubr.f32.gmra.mrb[0].mxu0 %v692
        %v932 = vpop.f32.mrb[0].mxu0
        %v933 = vadd.f32 0.0, %v932
        %v934 = vpop.f32.mrb[0].mxu0
        %935 = vdwg.mxu0
        %v936 = vmax.f32 %v778, 0.0
        %v937 = vmax.f32 %v783, 0.0
        %v938 = vmax.f32 %v788, 0.0
        %v939 = vmax.f32 %v793, 0.0
        %v940 = vmax.f32 %v798, 0.0
        %v941 = vmax.f32 %v803, 0.0
        %v942 = vmax.f32 %v808, 0.0
        %v943 = vmax.f32 %v813, 0.0
        %v944 = vmax.f32 %v818, 0.0
        %v945 = vmax.f32 %v823, 0.0
        %v946 = vmax.f32 %v828, 0.0
        %v947 = vmax.f32 %v833, 0.0
        %v948 = vmax.f32 %v838, 0.0
        %v949 = vmax.f32 %v843, 0.0
        %v950 = vmax.f32 %v848, 0.0
        %v951 = vmax.f32 %v853, 0.0
        %v952 = vmax.f32 %v858, 0.0
        %v953 = vmax.f32 %v863, 0.0
        %v954 = vmax.f32 %v868, 0.0
        %v955 = vmax.f32 %v873, 0.0
        %v956 = vmax.f32 %v878, 0.0
        %v957 = vmax.f32 %v883, 0.0
        %v958 = vmax.f32 %v888, 0.0
        %v959 = vmax.f32 %v893, 0.0
        %v960 = vmax.f32 %v898, 0.0
        %v961 = vmax.f32 %v903, 0.0
        %v962 = vmax.f32 %v908, 0.0
        %v963 = vmax.f32 %v913, 0.0
        %v964 = vmax.f32 %v918, 0.0
        %v965 = vmax.f32 %v923, 0.0
        %v966 = vmax.f32 %v928, 0.0
        %v967 = vmax.f32 %v933, 0.0
        %v968 = vld [vmem:[%s6] sm:$0x1]
        %v970 = vlaneseq
        %v971 = vshrl.u32 %v970, 7
        %v972 = vsub.s32 0, %v971
        %v973 = vrot.slane %v968, %v972
        %v975 = vmul.f32 %v936, %v973
        %v976 = vmul.f32 %v937, %v973
        %v977 = vmul.f32 %v938, %v973
        %v978 = vmul.f32 %v939, %v973
        %v979 = vmul.f32 %v940, %v973
        %v980 = vmul.f32 %v941, %v973
        %v981 = vmul.f32 %v942, %v973
        %v982 = vmul.f32 %v943, %v973
        %v983 = vmul.f32 %v944, %v973
        %v984 = vmul.f32 %v945, %v973
        %v985 = vmul.f32 %v946, %v973
        %v986 = vmul.f32 %v947, %v973
        %v987 = vmul.f32 %v948, %v973
        %v988 = vmul.f32 %v949, %v973
        %v989 = vmul.f32 %v950, %v973
        %v990 = vmul.f32 %v951, %v973
        %v991 = vmul.f32 %v952, %v973
        %v992 = vmul.f32 %v953, %v973
        %v993 = vmul.f32 %v954, %v973
        %v994 = vmul.f32 %v955, %v973
        %v995 = vmul.f32 %v956, %v973
        %v996 = vmul.f32 %v957, %v973
        %v997 = vmul.f32 %v958, %v973
        %v998 = vmul.f32 %v959, %v973
        %v999 = vmul.f32 %v960, %v973
        %v1000 = vmul.f32 %v961, %v973
        %v1001 = vmul.f32 %v962, %v973
        %v1002 = vmul.f32 %v963, %v973
        %v1003 = vmul.f32 %v964, %v973
        %v1004 = vmul.f32 %v965, %v973
        %v1005 = vmul.f32 %v966, %v973
        %v1006 = vmul.f32 %v967, %v973
        %1007 = vadd.xlane.f32.xlu0 %v975
        %v1008 = vpop.xlane.xlu0 %1007
        %1009 = vadd.xlane.f32.xlu0 %v976
        %v1010 = vpop.xlane.xlu0 %1009
        %1011 = vadd.xlane.f32.xlu0 %v977
        %v1012 = vpop.xlane.xlu0 %1011
        %1013 = vadd.xlane.f32.xlu0 %v978
        %v1014 = vpop.xlane.xlu0 %1013
        %1015 = vadd.xlane.f32.xlu0 %v979
        %v1016 = vpop.xlane.xlu0 %1015
        %1017 = vadd.xlane.f32.xlu0 %v980
        %v1018 = vpop.xlane.xlu0 %1017
        %1019 = vadd.xlane.f32.xlu0 %v981
        %v1020 = vpop.xlane.xlu0 %1019
        %1021 = vadd.xlane.f32.xlu0 %v982
        %v1022 = vpop.xlane.xlu0 %1021
        %1023 = vadd.xlane.f32.xlu0 %v983
        %v1024 = vpop.xlane.xlu0 %1023
        %1025 = vadd.xlane.f32.xlu0 %v984
        %v1026 = vpop.xlane.xlu0 %1025
        %1027 = vadd.xlane.f32.xlu0 %v985
        %v1028 = vpop.xlane.xlu0 %1027
        %1029 = vadd.xlane.f32.xlu0 %v986
        %v1030 = vpop.xlane.xlu0 %1029
        %1031 = vadd.xlane.f32.xlu0 %v987
        %v1032 = vpop.xlane.xlu0 %1031
        %1033 = vadd.xlane.f32.xlu0 %v988
        %v1034 = vpop.xlane.xlu0 %1033
        %1035 = vadd.xlane.f32.xlu0 %v989
        %v1036 = vpop.xlane.xlu0 %1035
        %1037 = vadd.xlane.f32.xlu0 %v990
        %v1038 = vpop.xlane.xlu0 %1037
        %1039 = vadd.xlane.f32.xlu0 %v991
        %v1040 = vpop.xlane.xlu0 %1039
        %1041 = vadd.xlane.f32.xlu0 %v992
        %v1042 = vpop.xlane.xlu0 %1041
        %1043 = vadd.xlane.f32.xlu0 %v993
        %v1044 = vpop.xlane.xlu0 %1043
        %1045 = vadd.xlane.f32.xlu0 %v994
        %v1046 = vpop.xlane.xlu0 %1045
        %1047 = vadd.xlane.f32.xlu0 %v995
        %v1048 = vpop.xlane.xlu0 %1047
        %1049 = vadd.xlane.f32.xlu0 %v996
        %v1050 = vpop.xlane.xlu0 %1049
        %1051 = vadd.xlane.f32.xlu0 %v997
        %v1052 = vpop.xlane.xlu0 %1051
        %1053 = vadd.xlane.f32.xlu0 %v998
        %v1054 = vpop.xlane.xlu0 %1053
        %1055 = vadd.xlane.f32.xlu0 %v999
        %v1056 = vpop.xlane.xlu0 %1055
        %1057 = vadd.xlane.f32.xlu0 %v1000
        %v1058 = vpop.xlane.xlu0 %1057
        %1059 = vadd.xlane.f32.xlu0 %v1001
        %v1060 = vpop.xlane.xlu0 %1059
        %1061 = vadd.xlane.f32.xlu0 %v1002
        %v1062 = vpop.xlane.xlu0 %1061
        %1063 = vadd.xlane.f32.xlu0 %v1003
        %v1064 = vpop.xlane.xlu0 %1063
        %1065 = vadd.xlane.f32.xlu0 %v1004
        %v1066 = vpop.xlane.xlu0 %1065
        %1067 = vadd.xlane.f32.xlu0 %v1005
        %v1068 = vpop.xlane.xlu0 %1067
        %1069 = vadd.xlane.f32.xlu0 %v1006
        %v1070 = vpop.xlane.xlu0 %1069
        %s1071 = sld [smem:[#allocation5]]
        %v1072 = vstv %s1071
        %v1073 = vadd.f32 %v1008, %v1072
        %v1074 = vadd.f32 %v1010, %v1072
        %v1075 = vadd.f32 %v1012, %v1072
        %v1076 = vadd.f32 %v1014, %v1072
        %v1077 = vadd.f32 %v1016, %v1072
        %v1078 = vadd.f32 %v1018, %v1072
        %v1079 = vadd.f32 %v1020, %v1072
        %v1080 = vadd.f32 %v1022, %v1072
        %v1081 = vadd.f32 %v1024, %v1072
        %v1082 = vadd.f32 %v1026, %v1072
        %v1083 = vadd.f32 %v1028, %v1072
        %v1084 = vadd.f32 %v1030, %v1072
        %v1085 = vadd.f32 %v1032, %v1072
        %v1086 = vadd.f32 %v1034, %v1072
        %v1087 = vadd.f32 %v1036, %v1072
        %v1088 = vadd.f32 %v1038, %v1072
        %v1089 = vadd.f32 %v1040, %v1072
        %v1090 = vadd.f32 %v1042, %v1072
        %v1091 = vadd.f32 %v1044, %v1072
        %v1092 = vadd.f32 %v1046, %v1072
        %v1093 = vadd.f32 %v1048, %v1072
        %v1094 = vadd.f32 %v1050, %v1072
        %v1095 = vadd.f32 %v1052, %v1072
        %v1096 = vadd.f32 %v1054, %v1072
        %v1097 = vadd.f32 %v1056, %v1072
        %v1098 = vadd.f32 %v1058, %v1072
        %v1099 = vadd.f32 %v1060, %v1072
        %v1100 = vadd.f32 %v1062, %v1072
        %v1101 = vadd.f32 %v1064, %v1072
        %v1102 = vadd.f32 %v1066, %v1072
        %v1103 = vadd.f32 %v1068, %v1072
        %v1104 = vadd.f32 %v1070, %v1072
        %v1105 = vxor.u32 %v1073, 2147483648
        %v1106 = vxor.u32 %v1074, 2147483648
        %v1107 = vxor.u32 %v1075, 2147483648
        %v1108 = vxor.u32 %v1076, 2147483648
        %v1109 = vxor.u32 %v1077, 2147483648
        %v1110 = vxor.u32 %v1078, 2147483648
        %v1111 = vxor.u32 %v1079, 2147483648
        %v1112 = vxor.u32 %v1080, 2147483648
        %v1113 = vxor.u32 %v1081, 2147483648
        %v1114 = vxor.u32 %v1082, 2147483648
        %v1115 = vxor.u32 %v1083, 2147483648
        %v1116 = vxor.u32 %v1084, 2147483648
        %v1117 = vxor.u32 %v1085, 2147483648
        %v1118 = vxor.u32 %v1086, 2147483648
        %v1119 = vxor.u32 %v1087, 2147483648
        %v1120 = vxor.u32 %v1088, 2147483648
        %v1121 = vxor.u32 %v1089, 2147483648
        %v1122 = vxor.u32 %v1090, 2147483648
        %v1123 = vxor.u32 %v1091, 2147483648
        %v1124 = vxor.u32 %v1092, 2147483648
        %v1125 = vxor.u32 %v1093, 2147483648
        %v1126 = vxor.u32 %v1094, 2147483648
        %v1127 = vxor.u32 %v1095, 2147483648
        %v1128 = vxor.u32 %v1096, 2147483648
        %v1129 = vxor.u32 %v1097, 2147483648
        %v1130 = vxor.u32 %v1098, 2147483648
        %v1131 = vxor.u32 %v1099, 2147483648
        %v1132 = vxor.u32 %v1100, 2147483648
        %v1133 = vxor.u32 %v1101, 2147483648
        %v1134 = vxor.u32 %v1102, 2147483648
        %v1135 = vxor.u32 %v1103, 2147483648
        %v1136 = vxor.u32 %v1104, 2147483648
        %v1137 = vmul.f32 %v1105, 1.442695
        %v1138 = vpow.pop %v1137
        %v1139 = vmul.f32 %v1106, 1.442695
        %v1140 = vpow.pop %v1139
        %v1141 = vmul.f32 %v1107, 1.442695
        %v1142 = vpow.pop %v1141
        %v1143 = vmul.f32 %v1108, 1.442695
        %v1144 = vpow.pop %v1143
        %v1145 = vmul.f32 %v1109, 1.442695
        %v1146 = vpow.pop %v1145
        %v1147 = vmul.f32 %v1110, 1.442695
        %v1148 = vpow.pop %v1147
        %v1149 = vmul.f32 %v1111, 1.442695
        %v1150 = vpow.pop %v1149
        %v1151 = vmul.f32 %v1112, 1.442695
        %v1152 = vpow.pop %v1151
        %v1153 = vmul.f32 %v1113, 1.442695
        %v1154 = vpow.pop %v1153
        %v1155 = vmul.f32 %v1114, 1.442695
        %v1156 = vpow.pop %v1155
        %v1157 = vmul.f32 %v1115, 1.442695
        %v1158 = vpow.pop %v1157
        %v1159 = vmul.f32 %v1116, 1.442695
        %v1160 = vpow.pop %v1159
        %v1161 = vmul.f32 %v1117, 1.442695
        %v1162 = vpow.pop %v1161
        %v1163 = vmul.f32 %v1118, 1.442695
        %v1164 = vpow.pop %v1163
        %v1165 = vmul.f32 %v1119, 1.442695
        %v1166 = vpow.pop %v1165
        %v1167 = vmul.f32 %v1120, 1.442695
        %v1168 = vpow.pop %v1167
        %v1169 = vmul.f32 %v1121, 1.442695
        %v1170 = vpow.pop %v1169
        %v1171 = vmul.f32 %v1122, 1.442695
        %v1172 = vpow.pop %v1171
        %v1173 = vmul.f32 %v1123, 1.442695
        %v1174 = vpow.pop %v1173
        %v1175 = vmul.f32 %v1124, 1.442695
        %v1176 = vpow.pop %v1175
        %v1177 = vmul.f32 %v1125, 1.442695
        %v1178 = vpow.pop %v1177
        %v1179 = vmul.f32 %v1126, 1.442695
        %v1180 = vpow.pop %v1179
        %v1181 = vmul.f32 %v1127, 1.442695
        %v1182 = vpow.pop %v1181
        %v1183 = vmul.f32 %v1128, 1.442695
        %v1184 = vpow.pop %v1183
        %v1185 = vmul.f32 %v1129, 1.442695
        %v1186 = vpow.pop %v1185
        %v1187 = vmul.f32 %v1130, 1.442695
        %v1188 = vpow.pop %v1187
        %v1189 = vmul.f32 %v1131, 1.442695
        %v1190 = vpow.pop %v1189
        %v1191 = vmul.f32 %v1132, 1.442695
        %v1192 = vpow.pop %v1191
        %v1193 = vmul.f32 %v1133, 1.442695
        %v1194 = vpow.pop %v1193
        %v1195 = vmul.f32 %v1134, 1.442695
        %v1196 = vpow.pop %v1195
        %v1197 = vmul.f32 %v1135, 1.442695
        %v1198 = vpow.pop %v1197
        %v1199 = vmul.f32 %v1136, 1.442695
        %v1200 = vpow.pop %v1199
        %v1201 = vadd.f32 %v1138, 1.0
        %v1202 = vadd.f32 %v1140, 1.0
        %v1203 = vadd.f32 %v1142, 1.0
        %v1204 = vadd.f32 %v1144, 1.0
        %v1205 = vadd.f32 %v1146, 1.0
        %v1206 = vadd.f32 %v1148, 1.0
        %v1207 = vadd.f32 %v1150, 1.0
        %v1208 = vadd.f32 %v1152, 1.0
        %v1209 = vadd.f32 %v1154, 1.0
        %v1210 = vadd.f32 %v1156, 1.0
        %v1211 = vadd.f32 %v1158, 1.0
        %v1212 = vadd.f32 %v1160, 1.0
        %v1213 = vadd.f32 %v1162, 1.0
        %v1214 = vadd.f32 %v1164, 1.0
        %v1215 = vadd.f32 %v1166, 1.0
        %v1216 = vadd.f32 %v1168, 1.0
        %v1217 = vadd.f32 %v1170, 1.0
        %v1218 = vadd.f32 %v1172, 1.0
        %v1219 = vadd.f32 %v1174, 1.0
        %v1220 = vadd.f32 %v1176, 1.0
        %v1221 = vadd.f32 %v1178, 1.0
        %v1222 = vadd.f32 %v1180, 1.0
        %v1223 = vadd.f32 %v1182, 1.0
        %v1224 = vadd.f32 %v1184, 1.0
        %v1225 = vadd.f32 %v1186, 1.0
        %v1226 = vadd.f32 %v1188, 1.0
        %v1227 = vadd.f32 %v1190, 1.0
        %v1228 = vadd.f32 %v1192, 1.0
        %v1229 = vadd.f32 %v1194, 1.0
        %v1230 = vadd.f32 %v1196, 1.0
        %v1231 = vadd.f32 %v1198, 1.0
        %v1232 = vadd.f32 %v1200, 1.0
        %v1233 = vrcp.pop %v1201
        %v1234 = vmul.f32 1.0, %v1233
        %v1235 = vrcp.pop %v1202
        %v1236 = vmul.f32 1.0, %v1235
        %v1237 = vrcp.pop %v1203
        %v1238 = vmul.f32 1.0, %v1237
        %v1239 = vrcp.pop %v1204
        %v1240 = vmul.f32 1.0, %v1239
        %v1241 = vrcp.pop %v1205
        %v1242 = vmul.f32 1.0, %v1241
        %v1243 = vrcp.pop %v1206
        %v1244 = vmul.f32 1.0, %v1243
        %v1245 = vrcp.pop %v1207
        %v1246 = vmul.f32 1.0, %v1245
        %v1247 = vrcp.pop %v1208
        %v1248 = vmul.f32 1.0, %v1247
        %v1249 = vrcp.pop %v1209
        %v1250 = vmul.f32 1.0, %v1249
        %v1251 = vrcp.pop %v1210
        %v1252 = vmul.f32 1.0, %v1251
        %v1253 = vrcp.pop %v1211
        %v1254 = vmul.f32 1.0, %v1253
        %v1255 = vrcp.pop %v1212
        %v1256 = vmul.f32 1.0, %v1255
        %v1257 = vrcp.pop %v1213
        %v1258 = vmul.f32 1.0, %v1257
        %v1259 = vrcp.pop %v1214
        %v1260 = vmul.f32 1.0, %v1259
        %v1261 = vrcp.pop %v1215
        %v1262 = vmul.f32 1.0, %v1261
        %v1263 = vrcp.pop %v1216
        %v1264 = vmul.f32 1.0, %v1263
        %v1265 = vrcp.pop %v1217
        %v1266 = vmul.f32 1.0, %v1265
        %v1267 = vrcp.pop %v1218
        %v1268 = vmul.f32 1.0, %v1267
        %v1269 = vrcp.pop %v1219
        %v1270 = vmul.f32 1.0, %v1269
        %v1271 = vrcp.pop %v1220
        %v1272 = vmul.f32 1.0, %v1271
        %v1273 = vrcp.pop %v1221
        %v1274 = vmul.f32 1.0, %v1273
        %v1275 = vrcp.pop %v1222
        %v1276 = vmul.f32 1.0, %v1275
        %v1277 = vrcp.pop %v1223
        %v1278 = vmul.f32 1.0, %v1277
        %v1279 = vrcp.pop %v1224
        %v1280 = vmul.f32 1.0, %v1279
        %v1281 = vrcp.pop %v1225
        %v1282 = vmul.f32 1.0, %v1281
        %v1283 = vrcp.pop %v1226
        %v1284 = vmul.f32 1.0, %v1283
        %v1285 = vrcp.pop %v1227
        %v1286 = vmul.f32 1.0, %v1285
        %v1287 = vrcp.pop %v1228
        %v1288 = vmul.f32 1.0, %v1287
        %v1289 = vrcp.pop %v1229
        %v1290 = vmul.f32 1.0, %v1289
        %v1291 = vrcp.pop %v1230
        %v1292 = vmul.f32 1.0, %v1291
        %v1293 = vrcp.pop %v1231
        %v1294 = vmul.f32 1.0, %v1293
        %v1295 = vrcp.pop %v1232
        %v1296 = vmul.f32 1.0, %v1295
        %1297 = vxpose.xlu0.b32.start [1/16] %v1234, 128
        %1298 = vxpose.xlu0.b32.cont [2/16] %v1236, 128
        %1299 = vxpose.xlu0.b32.cont [3/16] %v1238, 128
        %1300 = vxpose.xlu0.b32.cont [4/16] %v1240, 128
        %1301 = vxpose.xlu0.b32.cont [5/16] %v1242, 128
        %1302 = vxpose.xlu0.b32.cont [6/16] %v1244, 128
        %1303 = vxpose.xlu0.b32.cont [7/16] %v1246, 128
        %1304 = vxpose.xlu0.b32.cont [8/16] %v1248, 128
        %1305 = vxpose.xlu0.b32.cont [9/16] %v1250, 128
        %1306 = vxpose.xlu0.b32.cont [10/16] %v1252, 128
        %1307 = vxpose.xlu0.b32.cont [11/16] %v1254, 128
        %1308 = vxpose.xlu0.b32.cont [12/16] %v1256, 128
        %1309 = vxpose.xlu0.b32.cont [13/16] %v1258, 128
        %1310 = vxpose.xlu0.b32.cont [14/16] %v1260, 128
        %1311 = vxpose.xlu0.b32.cont [15/16] %v1262, 128
        %1312 = vxpose.xlu0.b32.end [16/16] %v1264, 128
        %v1313 = vpop.trf.xlu0
        %v1314 = vpop.trf.xlu0
        %v1315 = vpop.trf.xlu0
        %v1316 = vpop.trf.xlu0
        %v1317 = vpop.trf.xlu0
        %v1318 = vpop.trf.xlu0
        %v1319 = vpop.trf.xlu0
        %v1320 = vpop.trf.xlu0
        %v1321 = vpop.trf.xlu0
        %v1322 = vpop.trf.xlu0
        %v1323 = vpop.trf.xlu0
        %v1324 = vpop.trf.xlu0
        %v1325 = vpop.trf.xlu0
        %v1326 = vpop.trf.xlu0
        %v1327 = vpop.trf.xlu0
        %v1328 = vpop.trf.xlu0
        %1329 = vxpose.xlu0.b32.start [1/16] %v1266, 128
        %1330 = vxpose.xlu0.b32.cont [2/16] %v1268, 128
        %1331 = vxpose.xlu0.b32.cont [3/16] %v1270, 128
        %1332 = vxpose.xlu0.b32.cont [4/16] %v1272, 128
        %1333 = vxpose.xlu0.b32.cont [5/16] %v1274, 128
        %1334 = vxpose.xlu0.b32.cont [6/16] %v1276, 128
        %1335 = vxpose.xlu0.b32.cont [7/16] %v1278, 128
        %1336 = vxpose.xlu0.b32.cont [8/16] %v1280, 128
        %1337 = vxpose.xlu0.b32.cont [9/16] %v1282, 128
        %1338 = vxpose.xlu0.b32.cont [10/16] %v1284, 128
        %1339 = vxpose.xlu0.b32.cont [11/16] %v1286, 128
        %1340 = vxpose.xlu0.b32.cont [12/16] %v1288, 128
        %1341 = vxpose.xlu0.b32.cont [13/16] %v1290, 128
        %1342 = vxpose.xlu0.b32.cont [14/16] %v1292, 128
        %1343 = vxpose.xlu0.b32.cont [15/16] %v1294, 128
        %1344 = vxpose.xlu0.b32.end [16/16] %v1296, 128
        %v1345 = vpop.trf.xlu0
        %v1346 = vpop.trf.xlu0
        %v1347 = vpop.trf.xlu0
        %v1348 = vpop.trf.xlu0
        %v1349 = vpop.trf.xlu0
        %v1350 = vpop.trf.xlu0
        %v1351 = vpop.trf.xlu0
        %v1352 = vpop.trf.xlu0
        %v1353 = vpop.trf.xlu0
        %v1354 = vpop.trf.xlu0
        %v1355 = vpop.trf.xlu0
        %v1356 = vpop.trf.xlu0
        %v1357 = vpop.trf.xlu0
        %v1358 = vpop.trf.xlu0
        %v1359 = vpop.trf.xlu0
        %v1360 = vpop.trf.xlu0
        %v1363 = vcombine.low %v1313, %v1345
        %v1365 = vunpack.c.l.s4 1966171168
        %v1366 = vunpack.c.0.s8 %v1365
        %v1367 = vlaneseq
        %v1368 = vshrl.u32 %v1367, 7
        %v1369 = vsub.s32 %v1366, %v1368
        %v1370 = vrot.slane %v1363, %v1369
        %v1372 = vunpack.c.l.s4 1966171168
        %v1373 = vunpack.c.0.s8 %v1372
        %v1374 = vlaneseq
        %v1375 = vshrl.u32 %v1374, 7
        %v1376 = vsub.s32 %v1373, %v1375
        %v1377 = vrot.slane %v1370, %v1376
        %v1379 = vlaneseq
        %vm1380 = vcmp.ge.s32.totalorder %v1379, 0
        %vm1381 = vcmp.lt.s32.totalorder %v1379, 256
        %vm1382 = vmand %vm1380, %vm1381
        %1383 = vst.msk [vmem:[%s371] sm:$0x3] %vm1382, %v1377
        %v1384 = vmul.f32 %v1234, %v537
        %v1385 = vmul.f32 %v1236, %v542
        %v1386 = vmul.f32 %v1238, %v547
        %v1387 = vmul.f32 %v1240, %v552
        %v1388 = vmul.f32 %v1242, %v557
        %v1389 = vmul.f32 %v1244, %v562
        %v1390 = vmul.f32 %v1246, %v567
        %v1391 = vmul.f32 %v1248, %v572
        %v1392 = vmul.f32 %v1250, %v577
        %v1393 = vmul.f32 %v1252, %v582
        %v1394 = vmul.f32 %v1254, %v587
        %v1395 = vmul.f32 %v1256, %v592
        %v1396 = vmul.f32 %v1258, %v597
        %v1397 = vmul.f32 %v1260, %v602
        %v1398 = vmul.f32 %v1262, %v607
        %v1399 = vmul.f32 %v1264, %v612
        %v1400 = vmul.f32 %v1266, %v617
        %v1401 = vmul.f32 %v1268, %v622
        %v1402 = vmul.f32 %v1270, %v627
        %v1403 = vmul.f32 %v1272, %v632
        %v1404 = vmul.f32 %v1274, %v637
        %v1405 = vmul.f32 %v1276, %v642
        %v1406 = vmul.f32 %v1278, %v647
        %v1407 = vmul.f32 %v1280, %v652
        %v1408 = vmul.f32 %v1282, %v657
        %v1409 = vmul.f32 %v1284, %v662
        %v1410 = vmul.f32 %v1286, %v667
        %v1411 = vmul.f32 %v1288, %v672
        %v1412 = vmul.f32 %v1290, %v677
        %v1413 = vmul.f32 %v1292, %v682
        %v1414 = vmul.f32 %v1294, %v687
        %v1415 = vmul.f32 %v1296, %v692
        %v1416 = vld [vmem:[#allocation11] sm:$0xff]
        %v1417 = vld [vmem:[#allocation11 + $0x8] sm:$0xff]
        %v1418 = vld [vmem:[#allocation11 + $0x10] sm:$0xff]
        %v1419 = vld [vmem:[#allocation11 + $0x18] sm:$0xff]
        %v1420 = vld [vmem:[#allocation11 + $0x20] sm:$0xff]
        %v1421 = vld [vmem:[#allocation11 + $0x28] sm:$0xff]
        %v1422 = vld [vmem:[#allocation11 + $0x30] sm:$0xff]
        %v1423 = vld [vmem:[#allocation11 + $0x38] sm:$0xff]
        %v1424 = vld [vmem:[#allocation11 + $0x40] sm:$0xff]
        %v1425 = vld [vmem:[#allocation11 + $0x48] sm:$0xff]
        %v1426 = vld [vmem:[#allocation11 + $0x50] sm:$0xff]
        %v1427 = vld [vmem:[#allocation11 + $0x58] sm:$0xff]
        %v1428 = vld [vmem:[#allocation11 + $0x60] sm:$0xff]
        %v1429 = vld [vmem:[#allocation11 + $0x68] sm:$0xff]
        %v1430 = vld [vmem:[#allocation11 + $0x70] sm:$0xff]
        %v1431 = vld [vmem:[#allocation11 + $0x78] sm:$0xff]
        %1432 = vmatprep.subr.mxu0 0.0
        %1433 = vmatpush1.msra.mxu0 %v1416
        %1434 = vmatprep.subr.mxu0 0.0
        %1435 = vmatpush1.msra.mxu0 %v1417
        %1436 = vmatprep.subr.mxu0 0.0
        %1437 = vmatpush1.msra.mxu0 %v1418
        %1438 = vmatprep.subr.mxu0 0.0
        %1439 = vmatpush1.msra.mxu0 %v1419
        %1440 = vmatprep.subr.mxu0 0.0
        %1441 = vmatpush1.msra.mxu0 %v1420
        %1442 = vmatprep.subr.mxu0 0.0
        %1443 = vmatpush1.msra.mxu0 %v1421
        %1444 = vmatprep.subr.mxu0 0.0
        %1445 = vmatpush1.msra.mxu0 %v1422
        %1446 = vmatprep.subr.mxu0 0.0
        %1447 = vmatpush1.msra.mxu0 %v1423
        %1448 = vmatprep.subr.mxu0 0.0
        %1449 = vmatpush1.msra.mxu0 %v1424
        %1450 = vmatprep.subr.mxu0 0.0
        %1451 = vmatpush1.msra.mxu0 %v1425
        %1452 = vmatprep.subr.mxu0 0.0
        %1453 = vmatpush1.msra.mxu0 %v1426
        %1454 = vmatprep.subr.mxu0 0.0
        %1455 = vmatpush1.msra.mxu0 %v1427
        %1456 = vmatprep.subr.mxu0 0.0
        %1457 = vmatpush1.msra.mxu0 %v1428
        %1458 = vmatprep.subr.mxu0 0.0
        %1459 = vmatpush1.msra.mxu0 %v1429
        %1460 = vmatprep.subr.mxu0 0.0
        %1461 = vmatpush1.msra.mxu0 %v1430
        %1462 = vmatprep.subr.mxu0 0.0
        %1463 = vmatpush1.msra.mxu0 %v1431
        %1464 = vmatprep.subr.mxu0 0.0
        %1465 = vmatpush1.msra.mxu0 0.0
        %1466 = vmatprep.subr.mxu0 0.0
        %1467 = vmatpush1.msra.mxu0 0.0
        %1468 = vmatprep.subr.mxu0 0.0
        %1469 = vmatpush1.msra.mxu0 0.0
        %1470 = vmatprep.subr.mxu0 0.0
        %1471 = vmatpush1.msra.mxu0 0.0
        %1472 = vmatprep.subr.mxu0 0.0
        %1473 = vmatpush1.msra.mxu0 0.0
        %1474 = vmatprep.subr.mxu0 0.0
        %1475 = vmatpush1.msra.mxu0 0.0
        %1476 = vmatprep.subr.mxu0 0.0
        %1477 = vmatpush1.msra.mxu0 0.0
        %1478 = vmatprep.subr.mxu0 0.0
        %1479 = vmatpush1.msra.mxu0 0.0
        %1480 = vmatprep.subr.mxu0 0.0
        %1481 = vmatpush1.msra.mxu0 0.0
        %1482 = vmatprep.subr.mxu0 0.0
        %1483 = vmatpush1.msra.mxu0 0.0
        %1484 = vmatprep.subr.mxu0 0.0
        %1485 = vmatpush1.msra.mxu0 0.0
        %1486 = vmatprep.subr.mxu0 0.0
        %1487 = vmatpush1.msra.mxu0 0.0
        %1488 = vmatprep.subr.mxu0 0.0
        %1489 = vmatpush1.msra.mxu0 0.0
        %1490 = vmatprep.subr.mxu0 0.0
        %1491 = vmatpush1.msra.mxu0 0.0
        %1492 = vmatprep.subr.mxu0 0.0
        %1493 = vmatpush1.msra.mxu0 0.0
        %1494 = vmatprep.subr.mxu0 0.0
        %1495 = vmatpush1.msra.mxu0 0.0
        %1496 = vmatprep.mubr.f32.mxu0 0.0
        %1497 = vmatmul.mubr.f32.gmra.mrb[0].mxu0 %v1384
        %v1498 = vpop.f32.mrb[0].mxu0
        %v1499 = vadd.f32 0.0, %v1498
        %v1500 = vpop.f32.mrb[0].mxu0
        %1501 = vmatprep.mubr.f32.mxu0 0.0
        %1502 = vmatmul.mubr.f32.gmra.mrb[0].mxu0 %v1385
        %v1503 = vpop.f32.mrb[0].mxu0
        %v1504 = vadd.f32 0.0, %v1503
        %v1505 = vpop.f32.mrb[0].mxu0
        %1506 = vmatprep.mubr.f32.mxu0 0.0
        %1507 = vmatmul.mubr.f32.gmra.mrb[0].mxu0 %v1386
        %v1508 = vpop.f32.mrb[0].mxu0
        %v1509 = vadd.f32 0.0, %v1508
        %v1510 = vpop.f32.mrb[0].mxu0
        %1511 = vmatprep.mubr.f32.mxu0 0.0
        %1512 = vmatmul.mubr.f32.gmra.mrb[0].mxu0 %v1387
        %v1513 = vpop.f32.mrb[0].mxu0
        %v1514 = vadd.f32 0.0, %v1513
        %v1515 = vpop.f32.mrb[0].mxu0
        %1516 = vmatprep.mubr.f32.mxu0 0.0
        %1517 = vmatmul.mubr.f32.gmra.mrb[0].mxu0 %v1388
        %v1518 = vpop.f32.mrb[0].mxu0
        %v1519 = vadd.f32 0.0, %v1518
        %v1520 = vpop.f32.mrb[0].mxu0
        %1521 = vmatprep.mubr.f32.mxu0 0.0
        %1522 = vmatmul.mubr.f32.gmra.mrb[0].mxu0 %v1389
        %v1523 = vpop.f32.mrb[0].mxu0
        %v1524 = vadd.f32 0.0, %v1523
        %v1525 = vpop.f32.mrb[0].mxu0
        %1526 = vmatprep.mubr.f32.mxu0 0.0
        %1527 = vmatmul.mubr.f32.gmra.mrb[0].mxu0 %v1390
        %v1528 = vpop.f32.mrb[0].mxu0
        %v1529 = vadd.f32 0.0, %v1528
        %v1530 = vpop.f32.mrb[0].mxu0
        %1531 = vmatprep.mubr.f32.mxu0 0.0
        %1532 = vmatmul.mubr.f32.gmra.mrb[0].mxu0 %v1391
        %v1533 = vpop.f32.mrb[0].mxu0
        %v1534 = vadd.f32 0.0, %v1533
        %v1535 = vpop.f32.mrb[0].mxu0
        %1536 = vmatprep.mubr.f32.mxu0 0.0
        %1537 = vmatmul.mubr.f32.gmra.mrb[0].mxu0 %v1392
        %v1538 = vpop.f32.mrb[0].mxu0
        %v1539 = vadd.f32 0.0, %v1538
        %v1540 = vpop.f32.mrb[0].mxu0
        %1541 = vmatprep.mubr.f32.mxu0 0.0
        %1542 = vmatmul.mubr.f32.gmra.mrb[0].mxu0 %v1393
        %v1543 = vpop.f32.mrb[0].mxu0
        %v1544 = vadd.f32 0.0, %v1543
        %v1545 = vpop.f32.mrb[0].mxu0
        %1546 = vmatprep.mubr.f32.mxu0 0.0
        %1547 = vmatmul.mubr.f32.gmra.mrb[0].mxu0 %v1394
        %v1548 = vpop.f32.mrb[0].mxu0
        %v1549 = vadd.f32 0.0, %v1548
        %v1550 = vpop.f32.mrb[0].mxu0
        %1551 = vmatprep.mubr.f32.mxu0 0.0
        %1552 = vmatmul.mubr.f32.gmra.mrb[0].mxu0 %v1395
        %v1553 = vpop.f32.mrb[0].mxu0
        %v1554 = vadd.f32 0.0, %v1553
        %v1555 = vpop.f32.mrb[0].mxu0
        %1556 = vmatprep.mubr.f32.mxu0 0.0
        %1557 = vmatmul.mubr.f32.gmra.mrb[0].mxu0 %v1396
        %v1558 = vpop.f32.mrb[0].mxu0
        %v1559 = vadd.f32 0.0, %v1558
        %v1560 = vpop.f32.mrb[0].mxu0
        %1561 = vmatprep.mubr.f32.mxu0 0.0
        %1562 = vmatmul.mubr.f32.gmra.mrb[0].mxu0 %v1397
        %v1563 = vpop.f32.mrb[0].mxu0
        %v1564 = vadd.f32 0.0, %v1563
        %v1565 = vpop.f32.mrb[0].mxu0
        %1566 = vmatprep.mubr.f32.mxu0 0.0
        %1567 = vmatmul.mubr.f32.gmra.mrb[0].mxu0 %v1398
        %v1568 = vpop.f32.mrb[0].mxu0
        %v1569 = vadd.f32 0.0, %v1568
        %v1570 = vpop.f32.mrb[0].mxu0
        %1571 = vmatprep.mubr.f32.mxu0 0.0
        %1572 = vmatmul.mubr.f32.gmra.mrb[0].mxu0 %v1399
        %v1573 = vpop.f32.mrb[0].mxu0
        %v1574 = vadd.f32 0.0, %v1573
        %v1575 = vpop.f32.mrb[0].mxu0
        %1576 = vmatprep.mubr.f32.mxu0 0.0
        %1577 = vmatmul.mubr.f32.gmra.mrb[0].mxu0 %v1400
        %v1578 = vpop.f32.mrb[0].mxu0
        %v1579 = vadd.f32 0.0, %v1578
        %v1580 = vpop.f32.mrb[0].mxu0
        %1581 = vmatprep.mubr.f32.mxu0 0.0
        %1582 = vmatmul.mubr.f32.gmra.mrb[0].mxu0 %v1401
        %v1583 = vpop.f32.mrb[0].mxu0
        %v1584 = vadd.f32 0.0, %v1583
        %v1585 = vpop.f32.mrb[0].mxu0
        %1586 = vmatprep.mubr.f32.mxu0 0.0
        %1587 = vmatmul.mubr.f32.gmra.mrb[0].mxu0 %v1402
        %v1588 = vpop.f32.mrb[0].mxu0
        %v1589 = vadd.f32 0.0, %v1588
        %v1590 = vpop.f32.mrb[0].mxu0
        %1591 = vmatprep.mubr.f32.mxu0 0.0
        %1592 = vmatmul.mubr.f32.gmra.mrb[0].mxu0 %v1403
        %v1593 = vpop.f32.mrb[0].mxu0
        %v1594 = vadd.f32 0.0, %v1593
        %v1595 = vpop.f32.mrb[0].mxu0
        %1596 = vmatprep.mubr.f32.mxu0 0.0
        %1597 = vmatmul.mubr.f32.gmra.mrb[0].mxu0 %v1404
        %v1598 = vpop.f32.mrb[0].mxu0
        %v1599 = vadd.f32 0.0, %v1598
        %v1600 = vpop.f32.mrb[0].mxu0
        %1601 = vmatprep.mubr.f32.mxu0 0.0
        %1602 = vmatmul.mubr.f32.gmra.mrb[0].mxu0 %v1405
        %v1603 = vpop.f32.mrb[0].mxu0
        %v1604 = vadd.f32 0.0, %v1603
        %v1605 = vpop.f32.mrb[0].mxu0
        %1606 = vmatprep.mubr.f32.mxu0 0.0
        %1607 = vmatmul.mubr.f32.gmra.mrb[0].mxu0 %v1406
        %v1608 = vpop.f32.mrb[0].mxu0
        %v1609 = vadd.f32 0.0, %v1608
        %v1610 = vpop.f32.mrb[0].mxu0
        %1611 = vmatprep.mubr.f32.mxu0 0.0
        %1612 = vmatmul.mubr.f32.gmra.mrb[0].mxu0 %v1407
        %v1613 = vpop.f32.mrb[0].mxu0
        %v1614 = vadd.f32 0.0, %v1613
        %v1615 = vpop.f32.mrb[0].mxu0
        %1616 = vmatprep.mubr.f32.mxu0 0.0
        %1617 = vmatmul.mubr.f32.gmra.mrb[0].mxu0 %v1408
        %v1618 = vpop.f32.mrb[0].mxu0
        %v1619 = vadd.f32 0.0, %v1618
        %v1620 = vpop.f32.mrb[0].mxu0
        %1621 = vmatprep.mubr.f32.mxu0 0.0
        %1622 = vmatmul.mubr.f32.gmra.mrb[0].mxu0 %v1409
        %v1623 = vpop.f32.mrb[0].mxu0
        %v1624 = vadd.f32 0.0, %v1623
        %v1625 = vpop.f32.mrb[0].mxu0
        %1626 = vmatprep.mubr.f32.mxu0 0.0
        %1627 = vmatmul.mubr.f32.gmra.mrb[0].mxu0 %v1410
        %v1628 = vpop.f32.mrb[0].mxu0
        %v1629 = vadd.f32 0.0, %v1628
        %v1630 = vpop.f32.mrb[0].mxu0
        %1631 = vmatprep.mubr.f32.mxu0 0.0
        %1632 = vmatmul.mubr.f32.gmra.mrb[0].mxu0 %v1411
        %v1633 = vpop.f32.mrb[0].mxu0
        %v1634 = vadd.f32 0.0, %v1633
        %v1635 = vpop.f32.mrb[0].mxu0
        %1636 = vmatprep.mubr.f32.mxu0 0.0
        %1637 = vmatmul.mubr.f32.gmra.mrb[0].mxu0 %v1412
        %v1638 = vpop.f32.mrb[0].mxu0
        %v1639 = vadd.f32 0.0, %v1638
        %v1640 = vpop.f32.mrb[0].mxu0
        %1641 = vmatprep.mubr.f32.mxu0 0.0
        %1642 = vmatmul.mubr.f32.gmra.mrb[0].mxu0 %v1413
        %v1643 = vpop.f32.mrb[0].mxu0
        %v1644 = vadd.f32 0.0, %v1643
        %v1645 = vpop.f32.mrb[0].mxu0
        %1646 = vmatprep.mubr.f32.mxu0 0.0
        %1647 = vmatmul.mubr.f32.gmra.mrb[0].mxu0 %v1414
        %v1648 = vpop.f32.mrb[0].mxu0
        %v1649 = vadd.f32 0.0, %v1648
        %v1650 = vpop.f32.mrb[0].mxu0
        %1651 = vmatprep.mubr.f32.mxu0 0.0
        %1652 = vmatmul.mubr.f32.gmra.mrb[0].mxu0 %v1415
        %v1653 = vpop.f32.mrb[0].mxu0
        %v1654 = vadd.f32 0.0, %v1653
        %v1655 = vpop.f32.mrb[0].mxu0
        %1656 = vdwg.mxu0
        %v1657 = vpack.c.bf16 %v1504, %v1499
        %v1658 = vpack.c.bf16 %v1514, %v1509
        %v1659 = vpack.c.bf16 %v1524, %v1519
        %v1660 = vpack.c.bf16 %v1534, %v1529
        %v1661 = vpack.c.bf16 %v1544, %v1539
        %v1662 = vpack.c.bf16 %v1554, %v1549
        %v1663 = vpack.c.bf16 %v1564, %v1559
        %v1664 = vpack.c.bf16 %v1574, %v1569
        %v1665 = vpack.c.bf16 %v1584, %v1579
        %v1666 = vpack.c.bf16 %v1594, %v1589
        %v1667 = vpack.c.bf16 %v1604, %v1599
        %v1668 = vpack.c.bf16 %v1614, %v1609
        %v1669 = vpack.c.bf16 %v1624, %v1619
        %v1670 = vpack.c.bf16 %v1634, %v1629
        %v1671 = vpack.c.bf16 %v1644, %v1639
        %v1672 = vpack.c.bf16 %v1654, %v1649
        %v1673 = vld [vmem:[%s382] sm:$0xff]
        %v1674 = vld [vmem:[%s382 + $0x8] sm:$0xff]
        %v1675 = vld [vmem:[%s382 + $0x10] sm:$0xff]
        %v1676 = vld [vmem:[%s382 + $0x18] sm:$0xff]
        %v1677 = vld [vmem:[%s382 + $0x20] sm:$0xff]
        %v1678 = vld [vmem:[%s382 + $0x28] sm:$0xff]
        %v1679 = vld [vmem:[%s382 + $0x30] sm:$0xff]
        %v1680 = vld [vmem:[%s382 + $0x38] sm:$0xff]
        %v1681 = vld [vmem:[%s382 + $0x40] sm:$0xff]
        %v1682 = vld [vmem:[%s382 + $0x48] sm:$0xff]
        %v1683 = vld [vmem:[%s382 + $0x50] sm:$0xff]
        %v1684 = vld [vmem:[%s382 + $0x58] sm:$0xff]
        %v1685 = vld [vmem:[%s382 + $0x60] sm:$0xff]
        %v1686 = vld [vmem:[%s382 + $0x68] sm:$0xff]
        %v1687 = vld [vmem:[%s382 + $0x70] sm:$0xff]
        %v1688 = vld [vmem:[%s382 + $0x78] sm:$0xff]
        %v1689 = vld [vmem:[%s382 + $0x80] sm:$0xff]
        %v1690 = vld [vmem:[%s382 + $0x88] sm:$0xff]
        %v1691 = vld [vmem:[%s382 + $0x90] sm:$0xff]
        %v1692 = vld [vmem:[%s382 + $0x98] sm:$0xff]
        %v1693 = vld [vmem:[%s382 + $0xa0] sm:$0xff]
        %v1694 = vld [vmem:[%s382 + $0xa8] sm:$0xff]
        %v1695 = vld [vmem:[%s382 + $0xb0] sm:$0xff]
        %v1696 = vld [vmem:[%s382 + $0xb8] sm:$0xff]
        %v1697 = vld [vmem:[%s382 + $0xc0] sm:$0xff]
        %v1698 = vld [vmem:[%s382 + $0xc8] sm:$0xff]
        %v1699 = vld [vmem:[%s382 + $0xd0] sm:$0xff]
        %v1700 = vld [vmem:[%s382 + $0xd8] sm:$0xff]
        %v1701 = vld [vmem:[%s382 + $0xe0] sm:$0xff]
        %v1702 = vld [vmem:[%s382 + $0xe8] sm:$0xff]
        %v1703 = vld [vmem:[%s382 + $0xf0] sm:$0xff]
        %v1704 = vld [vmem:[%s382 + $0xf8] sm:$0xff]
        %v1705 = vlaneseq
        %v1706 = vand.u32 %v1705, 127
        %v1707 = vadd.s32 %v1706, 128
        %s1708 = sld [smem:[#allocation3 + %s39]]
        %s1709 = sld [smem:[#allocation4 + %s39]]
        %s1710 = sadd.s32 %s1709, 1
        // While loop
        $region65: #{tpu_custom_call.1} parent=47 // loop_pre_header
          _
        $region66: #{tpu_custom_call.1} parent=47 // loop_header
          %s1712 = sphi %s1708, %s1714
          %p1713 = scmp.ge.s32.totalorder %s1712, %s1710
        $region67: #{tpu_custom_call.1} parent=47 // loop_header_branch
          %1716 = sbr.rel (%p1713) target = $region71
        $region68: #{tpu_custom_call.1} parent=47 // loop_body
          %s1717 = smul.u32 %s1712, 256
          %v1718 = vstv %s1717
          %v1719 = vsub.s32 %v1673, %v1718
          %v1720 = vsub.s32 %v1674, %v1718
          %v1721 = vsub.s32 %v1675, %v1718
          %v1722 = vsub.s32 %v1676, %v1718
          %v1723 = vsub.s32 %v1677, %v1718
          %v1724 = vsub.s32 %v1678, %v1718
          %v1725 = vsub.s32 %v1679, %v1718
          %v1726 = vsub.s32 %v1680, %v1718
          %v1727 = vsub.s32 %v1681, %v1718
          %v1728 = vsub.s32 %v1682, %v1718
          %v1729 = vsub.s32 %v1683, %v1718
          %v1730 = vsub.s32 %v1684, %v1718
          %v1731 = vsub.s32 %v1685, %v1718
          %v1732 = vsub.s32 %v1686, %v1718
          %v1733 = vsub.s32 %v1687, %v1718
          %v1734 = vsub.s32 %v1688, %v1718
          %v1735 = vsub.s32 %v1689, %v1718
          %v1736 = vsub.s32 %v1690, %v1718
          %v1737 = vsub.s32 %v1691, %v1718
          %v1738 = vsub.s32 %v1692, %v1718
          %v1739 = vsub.s32 %v1693, %v1718
          %v1740 = vsub.s32 %v1694, %v1718
          %v1741 = vsub.s32 %v1695, %v1718
          %v1742 = vsub.s32 %v1696, %v1718
          %v1743 = vsub.s32 %v1697, %v1718
          %v1744 = vsub.s32 %v1698, %v1718
          %v1745 = vsub.s32 %v1699, %v1718
          %v1746 = vsub.s32 %v1700, %v1718
          %v1747 = vsub.s32 %v1701, %v1718
          %v1748 = vsub.s32 %v1702, %v1718
          %v1749 = vsub.s32 %v1703, %v1718
          %v1750 = vsub.s32 %v1704, %v1718
          %1751 = vset.pattern.permute.xlu0 0
          %1752 = vperm.xlu0 %1751, %v1719
          %v1753 = vpop.permute.xlu0 %1752
          %1754 = vset.pattern.permute.xlu0 0
          %1755 = vperm.xlu0 %1754, %v1720
          %v1756 = vpop.permute.xlu0 %1755
          %1757 = vset.pattern.permute.xlu0 0
          %1758 = vperm.xlu0 %1757, %v1721
          %v1759 = vpop.permute.xlu0 %1758
          %1760 = vset.pattern.permute.xlu0 0
          %1761 = vperm.xlu0 %1760, %v1722
          %v1762 = vpop.permute.xlu0 %1761
          %1763 = vset.pattern.permute.xlu0 0
          %1764 = vperm.xlu0 %1763, %v1723
          %v1765 = vpop.permute.xlu0 %1764
          %1766 = vset.pattern.permute.xlu0 0
          %1767 = vperm.xlu0 %1766, %v1724
          %v1768 = vpop.permute.xlu0 %1767
          %1769 = vset.pattern.permute.xlu0 0
          %1770 = vperm.xlu0 %1769, %v1725
          %v1771 = vpop.permute.xlu0 %1770
          %1772 = vset.pattern.permute.xlu0 0
          %1773 = vperm.xlu0 %1772, %v1726
          %v1774 = vpop.permute.xlu0 %1773
          %1775 = vset.pattern.permute.xlu0 0
          %1776 = vperm.xlu0 %1775, %v1727
          %v1777 = vpop.permute.xlu0 %1776
          %1778 = vset.pattern.permute.xlu0 0
          %1779 = vperm.xlu0 %1778, %v1728
          %v1780 = vpop.permute.xlu0 %1779
          %1781 = vset.pattern.permute.xlu0 0
          %1782 = vperm.xlu0 %1781, %v1729
          %v1783 = vpop.permute.xlu0 %1782
          %1784 = vset.pattern.permute.xlu0 0
          %1785 = vperm.xlu0 %1784, %v1730
          %v1786 = vpop.permute.xlu0 %1785
          %1787 = vset.pattern.permute.xlu0 0
          %1788 = vperm.xlu0 %1787, %v1731
          %v1789 = vpop.permute.xlu0 %1788
          %1790 = vset.pattern.permute.xlu0 0
          %1791 = vperm.xlu0 %1790, %v1732
          %v1792 = vpop.permute.xlu0 %1791
          %1793 = vset.pattern.permute.xlu0 0
          %1794 = vperm.xlu0 %1793, %v1733
          %v1795 = vpop.permute.xlu0 %1794
          %1796 = vset.pattern.permute.xlu0 0
          %1797 = vperm.xlu0 %1796, %v1734
          %v1798 = vpop.permute.xlu0 %1797
          %1799 = vset.pattern.permute.xlu0 0
          %1800 = vperm.xlu0 %1799, %v1735
          %v1801 = vpop.permute.xlu0 %1800
          %1802 = vset.pattern.permute.xlu0 0
          %1803 = vperm.xlu0 %1802, %v1736
          %v1804 = vpop.permute.xlu0 %1803
          %1805 = vset.pattern.permute.xlu0 0
          %1806 = vperm.xlu0 %1805, %v1737
          %v1807 = vpop.permute.xlu0 %1806
          %1808 = vset.pattern.permute.xlu0 0
          %1809 = vperm.xlu0 %1808, %v1738
          %v1810 = vpop.permute.xlu0 %1809
          %1811 = vset.pattern.permute.xlu0 0
          %1812 = vperm.xlu0 %1811, %v1739
          %v1813 = vpop.permute.xlu0 %1812
          %1814 = vset.pattern.permute.xlu0 0
          %1815 = vperm.xlu0 %1814, %v1740
          %v1816 = vpop.permute.xlu0 %1815
          %1817 = vset.pattern.permute.xlu0 0
          %1818 = vperm.xlu0 %1817, %v1741
          %v1819 = vpop.permute.xlu0 %1818
          %1820 = vset.pattern.permute.xlu0 0
          %1821 = vperm.xlu0 %1820, %v1742
          %v1822 = vpop.permute.xlu0 %1821
          %1823 = vset.pattern.permute.xlu0 0
          %1824 = vperm.xlu0 %1823, %v1743
          %v1825 = vpop.permute.xlu0 %1824
          %1826 = vset.pattern.permute.xlu0 0
          %1827 = vperm.xlu0 %1826, %v1744
          %v1828 = vpop.permute.xlu0 %1827
          %1829 = vset.pattern.permute.xlu0 0
          %1830 = vperm.xlu0 %1829, %v1745
          %v1831 = vpop.permute.xlu0 %1830
          %1832 = vset.pattern.permute.xlu0 0
          %1833 = vperm.xlu0 %1832, %v1746
          %v1834 = vpop.permute.xlu0 %1833
          %1835 = vset.pattern.permute.xlu0 0
          %1836 = vperm.xlu0 %1835, %v1747
          %v1837 = vpop.permute.xlu0 %1836
          %1838 = vset.pattern.permute.xlu0 0
          %1839 = vperm.xlu0 %1838, %v1748
          %v1840 = vpop.permute.xlu0 %1839
          %1841 = vset.pattern.permute.xlu0 0
          %1842 = vperm.xlu0 %1841, %v1749
          %v1843 = vpop.permute.xlu0 %1842
          %1844 = vset.pattern.permute.xlu0 0
          %1845 = vperm.xlu0 %1844, %v1750
          %v1846 = vpop.permute.xlu0 %1845
          %vm1847 = vcmp.eq.s32.totalorder %v1753, %v1706
          %vm1848 = vcmp.eq.s32.totalorder %v1753, %v1707
          %vm1849 = vcmp.eq.s32.totalorder %v1756, %v1706
          %vm1850 = vcmp.eq.s32.totalorder %v1756, %v1707
          %vm1851 = vcmp.eq.s32.totalorder %v1759, %v1706
          %vm1852 = vcmp.eq.s32.totalorder %v1759, %v1707
          %vm1853 = vcmp.eq.s32.totalorder %v1762, %v1706
          %vm1854 = vcmp.eq.s32.totalorder %v1762, %v1707
          %vm1855 = vcmp.eq.s32.totalorder %v1765, %v1706
          %vm1856 = vcmp.eq.s32.totalorder %v1765, %v1707
          %vm1857 = vcmp.eq.s32.totalorder %v1768, %v1706
          %vm1858 = vcmp.eq.s32.totalorder %v1768, %v1707
          %vm1859 = vcmp.eq.s32.totalorder %v1771, %v1706
          %vm1860 = vcmp.eq.s32.totalorder %v1771, %v1707
          %vm1861 = vcmp.eq.s32.totalorder %v1774, %v1706
          %vm1862 = vcmp.eq.s32.totalorder %v1774, %v1707
          %vm1863 = vcmp.eq.s32.totalorder %v1777, %v1706
          %vm1864 = vcmp.eq.s32.totalorder %v1777, %v1707
          %vm1865 = vcmp.eq.s32.totalorder %v1780, %v1706
          %vm1866 = vcmp.eq.s32.totalorder %v1780, %v1707
          %vm1867 = vcmp.eq.s32.totalorder %v1783, %v1706
          %vm1868 = vcmp.eq.s32.totalorder %v1783, %v1707
          %vm1869 = vcmp.eq.s32.totalorder %v1786, %v1706
          %vm1870 = vcmp.eq.s32.totalorder %v1786, %v1707
          %vm1871 = vcmp.eq.s32.totalorder %v1789, %v1706
          %vm1872 = vcmp.eq.s32.totalorder %v1789, %v1707
          %vm1873 = vcmp.eq.s32.totalorder %v1792, %v1706
          %vm1874 = vcmp.eq.s32.totalorder %v1792, %v1707
          %vm1875 = vcmp.eq.s32.totalorder %v1795, %v1706
          %vm1876 = vcmp.eq.s32.totalorder %v1795, %v1707
          %vm1877 = vcmp.eq.s32.totalorder %v1798, %v1706
          %vm1878 = vcmp.eq.s32.totalorder %v1798, %v1707
          %vm1879 = vcmp.eq.s32.totalorder %v1801, %v1706
          %vm1880 = vcmp.eq.s32.totalorder %v1801, %v1707
          %vm1881 = vcmp.eq.s32.totalorder %v1804, %v1706
          %vm1882 = vcmp.eq.s32.totalorder %v1804, %v1707
          %vm1883 = vcmp.eq.s32.totalorder %v1807, %v1706
          %vm1884 = vcmp.eq.s32.totalorder %v1807, %v1707
          %vm1885 = vcmp.eq.s32.totalorder %v1810, %v1706
          %vm1886 = vcmp.eq.s32.totalorder %v1810, %v1707
          %vm1887 = vcmp.eq.s32.totalorder %v1813, %v1706
          %vm1888 = vcmp.eq.s32.totalorder %v1813, %v1707
          %vm1889 = vcmp.eq.s32.totalorder %v1816, %v1706
          %vm1890 = vcmp.eq.s32.totalorder %v1816, %v1707
          %vm1891 = vcmp.eq.s32.totalorder %v1819, %v1706
          %vm1892 = vcmp.eq.s32.totalorder %v1819, %v1707
          %vm1893 = vcmp.eq.s32.totalorder %v1822, %v1706
          %vm1894 = vcmp.eq.s32.totalorder %v1822, %v1707
          %vm1895 = vcmp.eq.s32.totalorder %v1825, %v1706
          %vm1896 = vcmp.eq.s32.totalorder %v1825, %v1707
          %vm1897 = vcmp.eq.s32.totalorder %v1828, %v1706
          %vm1898 = vcmp.eq.s32.totalorder %v1828, %v1707
          %vm1899 = vcmp.eq.s32.totalorder %v1831, %v1706
          %vm1900 = vcmp.eq.s32.totalorder %v1831, %v1707
          %vm1901 = vcmp.eq.s32.totalorder %v1834, %v1706
          %vm1902 = vcmp.eq.s32.totalorder %v1834, %v1707
          %vm1903 = vcmp.eq.s32.totalorder %v1837, %v1706
          %vm1904 = vcmp.eq.s32.totalorder %v1837, %v1707
          %vm1905 = vcmp.eq.s32.totalorder %v1840, %v1706
          %vm1906 = vcmp.eq.s32.totalorder %v1840, %v1707
          %vm1907 = vcmp.eq.s32.totalorder %v1843, %v1706
          %vm1908 = vcmp.eq.s32.totalorder %v1843, %v1707
          %vm1909 = vcmp.eq.s32.totalorder %v1846, %v1706
          %vm1910 = vcmp.eq.s32.totalorder %v1846, %v1707
          %v1911 = vsel %vm1847, 1, 0
          %v1912 = vsel %vm1848, 1, 0
          %v1913 = vsel %vm1849, 1, 0
          %v1914 = vsel %vm1850, 1, 0
          %v1915 = vsel %vm1851, 1, 0
          %v1916 = vsel %vm1852, 1, 0
          %v1917 = vsel %vm1853, 1, 0
          %v1918 = vsel %vm1854, 1, 0
          %v1919 = vsel %vm1855, 1, 0
          %v1920 = vsel %vm1856, 1, 0
          %v1921 = vsel %vm1857, 1, 0
          %v1922 = vsel %vm1858, 1, 0
          %v1923 = vsel %vm1859, 1, 0
          %v1924 = vsel %vm1860, 1, 0
          %v1925 = vsel %vm1861, 1, 0
          %v1926 = vsel %vm1862, 1, 0
          %v1927 = vsel %vm1863, 1, 0
          %v1928 = vsel %vm1864, 1, 0
          %v1929 = vsel %vm1865, 1, 0
          %v1930 = vsel %vm1866, 1, 0
          %v1931 = vsel %vm1867, 1, 0
          %v1932 = vsel %vm1868, 1, 0
          %v1933 = vsel %vm1869, 1, 0
          %v1934 = vsel %vm1870, 1, 0
          %v1935 = vsel %vm1871, 1, 0
          %v1936 = vsel %vm1872, 1, 0
          %v1937 = vsel %vm1873, 1, 0
          %v1938 = vsel %vm1874, 1, 0
          %v1939 = vsel %vm1875, 1, 0
          %v1940 = vsel %vm1876, 1, 0
          %v1941 = vsel %vm1877, 1, 0
          %v1942 = vsel %vm1878, 1, 0
          %v1943 = vsel %vm1879, 1, 0
          %v1944 = vsel %vm1880, 1, 0
          %v1945 = vsel %vm1881, 1, 0
          %v1946 = vsel %vm1882, 1, 0
          %v1947 = vsel %vm1883, 1, 0
          %v1948 = vsel %vm1884, 1, 0
          %v1949 = vsel %vm1885, 1, 0
          %v1950 = vsel %vm1886, 1, 0
          %v1951 = vsel %vm1887, 1, 0
          %v1952 = vsel %vm1888, 1, 0
          %v1953 = vsel %vm1889, 1, 0
          %v1954 = vsel %vm1890, 1, 0
          %v1955 = vsel %vm1891, 1, 0
          %v1956 = vsel %vm1892, 1, 0
          %v1957 = vsel %vm1893, 1, 0
          %v1958 = vsel %vm1894, 1, 0
          %v1959 = vsel %vm1895, 1, 0
          %v1960 = vsel %vm1896, 1, 0
          %v1961 = vsel %vm1897, 1, 0
          %v1962 = vsel %vm1898, 1, 0
          %v1963 = vsel %vm1899, 1, 0
          %v1964 = vsel %vm1900, 1, 0
          %v1965 = vsel %vm1901, 1, 0
          %v1966 = vsel %vm1902, 1, 0
          %v1967 = vsel %vm1903, 1, 0
          %v1968 = vsel %vm1904, 1, 0
          %v1969 = vsel %vm1905, 1, 0
          %v1970 = vsel %vm1906, 1, 0
          %v1971 = vsel %vm1907, 1, 0
          %v1972 = vsel %vm1908, 1, 0
          %v1973 = vsel %vm1909, 1, 0
          %v1974 = vsel %vm1910, 1, 0
          %v1975 = vcvt.s32.f32 %v1911
          %v1976 = vcvt.s32.f32 %v1912
          %v1977 = vcvt.s32.f32 %v1913
          %v1978 = vcvt.s32.f32 %v1914
          %v1979 = vcvt.s32.f32 %v1915
          %v1980 = vcvt.s32.f32 %v1916
          %v1981 = vcvt.s32.f32 %v1917
          %v1982 = vcvt.s32.f32 %v1918
          %v1983 = vcvt.s32.f32 %v1919
          %v1984 = vcvt.s32.f32 %v1920
          %v1985 = vcvt.s32.f32 %v1921
          %v1986 = vcvt.s32.f32 %v1922
          %v1987 = vcvt.s32.f32 %v1923
          %v1988 = vcvt.s32.f32 %v1924
          %v1989 = vcvt.s32.f32 %v1925
          %v1990 = vcvt.s32.f32 %v1926
          %v1991 = vcvt.s32.f32 %v1927
          %v1992 = vcvt.s32.f32 %v1928
          %v1993 = vcvt.s32.f32 %v1929
          %v1994 = vcvt.s32.f32 %v1930
          %v1995 = vcvt.s32.f32 %v1931
          %v1996 = vcvt.s32.f32 %v1932
          %v1997 = vcvt.s32.f32 %v1933
          %v1998 = vcvt.s32.f32 %v1934
          %v1999 = vcvt.s32.f32 %v1935
          %v2000 = vcvt.s32.f32 %v1936
          %v2001 = vcvt.s32.f32 %v1937
          %v2002 = vcvt.s32.f32 %v1938
          %v2003 = vcvt.s32.f32 %v1939
          %v2004 = vcvt.s32.f32 %v1940
          %v2005 = vcvt.s32.f32 %v1941
          %v2006 = vcvt.s32.f32 %v1942
          %v2007 = vcvt.s32.f32 %v1943
          %v2008 = vcvt.s32.f32 %v1944
          %v2009 = vcvt.s32.f32 %v1945
          %v2010 = vcvt.s32.f32 %v1946
          %v2011 = vcvt.s32.f32 %v1947
          %v2012 = vcvt.s32.f32 %v1948
          %v2013 = vcvt.s32.f32 %v1949
          %v2014 = vcvt.s32.f32 %v1950
          %v2015 = vcvt.s32.f32 %v1951
          %v2016 = vcvt.s32.f32 %v1952
          %v2017 = vcvt.s32.f32 %v1953
          %v2018 = vcvt.s32.f32 %v1954
          %v2019 = vcvt.s32.f32 %v1955
          %v2020 = vcvt.s32.f32 %v1956
          %v2021 = vcvt.s32.f32 %v1957
          %v2022 = vcvt.s32.f32 %v1958
          %v2023 = vcvt.s32.f32 %v1959
          %v2024 = vcvt.s32.f32 %v1960
          %v2025 = vcvt.s32.f32 %v1961
          %v2026 = vcvt.s32.f32 %v1962
          %v2027 = vcvt.s32.f32 %v1963
          %v2028 = vcvt.s32.f32 %v1964
          %v2029 = vcvt.s32.f32 %v1965
          %v2030 = vcvt.s32.f32 %v1966
          %v2031 = vcvt.s32.f32 %v1967
          %v2032 = vcvt.s32.f32 %v1968
          %v2033 = vcvt.s32.f32 %v1969
          %v2034 = vcvt.s32.f32 %v1970
          %v2035 = vcvt.s32.f32 %v1971
          %v2036 = vcvt.s32.f32 %v1972
          %v2037 = vcvt.s32.f32 %v1973
          %v2038 = vcvt.s32.f32 %v1974
          %v2039 = vpack.c.bf16 %v1977, %v1975
          %v2040 = vpack.c.bf16 %v1978, %v1976
          %v2041 = vpack.c.bf16 %v1981, %v1979
          %v2042 = vpack.c.bf16 %v1982, %v1980
          %v2043 = vpack.c.bf16 %v1985, %v1983
          %v2044 = vpack.c.bf16 %v1986, %v1984
          %v2045 = vpack.c.bf16 %v1989, %v1987
          %v2046 = vpack.c.bf16 %v1990, %v1988
          %v2047 = vpack.c.bf16 %v1993, %v1991
          %v2048 = vpack.c.bf16 %v1994, %v1992
          %v2049 = vpack.c.bf16 %v1997, %v1995
          %v2050 = vpack.c.bf16 %v1998, %v1996
          %v2051 = vpack.c.bf16 %v2001, %v1999
          %v2052 = vpack.c.bf16 %v2002, %v2000
          %v2053 = vpack.c.bf16 %v2005, %v2003
          %v2054 = vpack.c.bf16 %v2006, %v2004
          %v2055 = vpack.c.bf16 %v2009, %v2007
          %v2056 = vpack.c.bf16 %v2010, %v2008
          %v2057 = vpack.c.bf16 %v2013, %v2011
          %v2058 = vpack.c.bf16 %v2014, %v2012
          %v2059 = vpack.c.bf16 %v2017, %v2015
          %v2060 = vpack.c.bf16 %v2018, %v2016
          %v2061 = vpack.c.bf16 %v2021, %v2019
          %v2062 = vpack.c.bf16 %v2022, %v2020
          %v2063 = vpack.c.bf16 %v2025, %v2023
          %v2064 = vpack.c.bf16 %v2026, %v2024
          %v2065 = vpack.c.bf16 %v2029, %v2027
          %v2066 = vpack.c.bf16 %v2030, %v2028
          %v2067 = vpack.c.bf16 %v2033, %v2031
          %v2068 = vpack.c.bf16 %v2034, %v2032
          %v2069 = vpack.c.bf16 %v2037, %v2035
          %v2070 = vpack.c.bf16 %v2038, %v2036
          %2071 = vxpose.xlu0.c.b16.start [1/8] %v2039, 128
          %2072 = vxpose.xlu0.c.b16.cont [2/8] %v2041, 128
          %2073 = vxpose.xlu0.c.b16.cont [3/8] %v2043, 128
          %2074 = vxpose.xlu0.c.b16.cont [4/8] %v2045, 128
          %2075 = vxpose.xlu0.c.b16.cont [5/8] %v2047, 128
          %2076 = vxpose.xlu0.c.b16.cont [6/8] %v2049, 128
          %2077 = vxpose.xlu0.c.b16.cont [7/8] %v2051, 128
          %2078 = vxpose.xlu0.c.b16.end [8/8] %v2053, 128
          %v2079 = vpop.trf.xlu0
          %v2080 = vpop.trf.xlu0
          %v2081 = vpop.trf.xlu0
          %v2082 = vpop.trf.xlu0
          %v2083 = vpop.trf.xlu0
          %v2084 = vpop.trf.xlu0
          %v2085 = vpop.trf.xlu0
          %v2086 = vpop.trf.xlu0
          %2087 = vxpose.xlu0.c.b16.start [1/8] %v2040, 128
          %2088 = vxpose.xlu0.c.b16.cont [2/8] %v2042, 128
          %2089 = vxpose.xlu0.c.b16.cont [3/8] %v2044, 128
          %2090 = vxpose.xlu0.c.b16.cont [4/8] %v2046, 128
          %2091 = vxpose.xlu0.c.b16.cont [5/8] %v2048, 128
          %2092 = vxpose.xlu0.c.b16.cont [6/8] %v2050, 128
          %2093 = vxpose.xlu0.c.b16.cont [7/8] %v2052, 128
          %2094 = vxpose.xlu0.c.b16.end [8/8] %v2054, 128
          %v2095 = vpop.trf.xlu0
          %v2096 = vpop.trf.xlu0
          %v2097 = vpop.trf.xlu0
          %v2098 = vpop.trf.xlu0
          %v2099 = vpop.trf.xlu0
          %v2100 = vpop.trf.xlu0
          %v2101 = vpop.trf.xlu0
          %v2102 = vpop.trf.xlu0
          %2103 = vxpose.xlu0.c.b16.start [1/8] %v2055, 128
          %2104 = vxpose.xlu0.c.b16.cont [2/8] %v2057, 128
          %2105 = vxpose.xlu0.c.b16.cont [3/8] %v2059, 128
          %2106 = vxpose.xlu0.c.b16.cont [4/8] %v2061, 128
          %2107 = vxpose.xlu0.c.b16.cont [5/8] %v2063, 128
          %2108 = vxpose.xlu0.c.b16.cont [6/8] %v2065, 128
          %2109 = vxpose.xlu0.c.b16.cont [7/8] %v2067, 128
          %2110 = vxpose.xlu0.c.b16.end [8/8] %v2069, 128
          %v2111 = vpop.trf.xlu0
          %v2112 = vpop.trf.xlu0
          %v2113 = vpop.trf.xlu0
          %v2114 = vpop.trf.xlu0
          %v2115 = vpop.trf.xlu0
          %v2116 = vpop.trf.xlu0
          %v2117 = vpop.trf.xlu0
          %v2118 = vpop.trf.xlu0
          %2119 = vxpose.xlu0.c.b16.start [1/8] %v2056, 128
          %2120 = vxpose.xlu0.c.b16.cont [2/8] %v2058, 128
          %2121 = vxpose.xlu0.c.b16.cont [3/8] %v2060, 128
          %2122 = vxpose.xlu0.c.b16.cont [4/8] %v2062, 128
          %2123 = vxpose.xlu0.c.b16.cont [5/8] %v2064, 128
          %2124 = vxpose.xlu0.c.b16.cont [6/8] %v2066, 128
          %2125 = vxpose.xlu0.c.b16.cont [7/8] %v2068, 128
          %2126 = vxpose.xlu0.c.b16.end [8/8] %v2070, 128
          %v2127 = vpop.trf.xlu0
          %v2128 = vpop.trf.xlu0
          %v2129 = vpop.trf.xlu0
          %v2130 = vpop.trf.xlu0
          %v2131 = vpop.trf.xlu0
          %v2132 = vpop.trf.xlu0
          %v2133 = vpop.trf.xlu0
          %v2134 = vpop.trf.xlu0
          %2135 = vmatprep.subr.bf16.mxu0 0
          %2136 = vmatpush1.bf16.msra.mxu0 %v1657
          %2137 = vmatprep.subr.bf16.mxu0 0
          %2138 = vmatpush1.bf16.msra.mxu0 %v1658
          %2139 = vmatprep.subr.bf16.mxu0 0
          %2140 = vmatpush1.bf16.msra.mxu0 %v1659
          %2141 = vmatprep.subr.bf16.mxu0 0
          %2142 = vmatpush1.bf16.msra.mxu0 %v1660
          %2143 = vmatprep.subr.bf16.mxu0 0
          %2144 = vmatpush1.bf16.msra.mxu0 %v1661
          %2145 = vmatprep.subr.bf16.mxu0 0
          %2146 = vmatpush1.bf16.msra.mxu0 %v1662
          %2147 = vmatprep.subr.bf16.mxu0 0
          %2148 = vmatpush1.bf16.msra.mxu0 %v1663
          %2149 = vmatprep.subr.bf16.mxu0 0
          %2150 = vmatpush1.bf16.msra.mxu0 %v1664
          %2151 = vmatprep.subr.bf16.mxu0 0
          %2152 = vmatpush1.bf16.msra.mxu0 %v1665
          %2153 = vmatprep.subr.bf16.mxu0 0
          %2154 = vmatpush1.bf16.msra.mxu0 %v1666
          %2155 = vmatprep.subr.bf16.mxu0 0
          %2156 = vmatpush1.bf16.msra.mxu0 %v1667
          %2157 = vmatprep.subr.bf16.mxu0 0
          %2158 = vmatpush1.bf16.msra.mxu0 %v1668
          %2159 = vmatprep.subr.bf16.mxu0 0
          %2160 = vmatpush1.bf16.msra.mxu0 %v1669
          %2161 = vmatprep.subr.bf16.mxu0 0
          %2162 = vmatpush1.bf16.msra.mxu0 %v1670
          %2163 = vmatprep.subr.bf16.mxu0 0
          %2164 = vmatpush1.bf16.msra.mxu0 %v1671
          %2165 = vmatprep.subr.bf16.mxu0 0
          %2166 = vmatpush1.bf16.msra.mxu0 %v1672
          %2167 = vmatprep.mubr.bf16.mxu0 %v2111
          %2168 = vmatmul.mubr.bf16.gmra.mrb[0].mxu0 %v2079
          %v2169 = vpop.f32.mrb[0].mxu0
          %v2170 = vadd.f32 0.0, %v2169
          %v2171 = vpop.f32.mrb[0].mxu0
          %v2172 = vpop.f32.mrb[0].mxu0
          %v2173 = vadd.f32 0.0, %v2172
          %v2174 = vpop.f32.mrb[0].mxu0
          %2175 = vmatprep.mubr.bf16.mxu0 %v2112
          %2176 = vmatmul.mubr.bf16.gmra.mrb[0].mxu0 %v2080
          %v2177 = vpop.f32.mrb[0].mxu0
          %v2178 = vadd.f32 0.0, %v2177
          %v2179 = vpop.f32.mrb[0].mxu0
          %v2180 = vpop.f32.mrb[0].mxu0
          %v2181 = vadd.f32 0.0, %v2180
          %v2182 = vpop.f32.mrb[0].mxu0
          %2183 = vmatprep.mubr.bf16.mxu0 %v2113
          %2184 = vmatmul.mubr.bf16.gmra.mrb[0].mxu0 %v2081
          %v2185 = vpop.f32.mrb[0].mxu0
          %v2186 = vadd.f32 0.0, %v2185
          %v2187 = vpop.f32.mrb[0].mxu0
          %v2188 = vpop.f32.mrb[0].mxu0
          %v2189 = vadd.f32 0.0, %v2188
          %v2190 = vpop.f32.mrb[0].mxu0
          %2191 = vmatprep.mubr.bf16.mxu0 %v2114
          %2192 = vmatmul.mubr.bf16.gmra.mrb[0].mxu0 %v2082
          %v2193 = vpop.f32.mrb[0].mxu0
          %v2194 = vadd.f32 0.0, %v2193
          %v2195 = vpop.f32.mrb[0].mxu0
          %v2196 = vpop.f32.mrb[0].mxu0
          %v2197 = vadd.f32 0.0, %v2196
          %v2198 = vpop.f32.mrb[0].mxu0
          %2199 = vmatprep.mubr.bf16.mxu0 %v2115
          %2200 = vmatmul.mubr.bf16.gmra.mrb[0].mxu0 %v2083
          %v2201 = vpop.f32.mrb[0].mxu0
          %v2202 = vadd.f32 0.0, %v2201
          %v2203 = vpop.f32.mrb[0].mxu0
          %v2204 = vpop.f32.mrb[0].mxu0
          %v2205 = vadd.f32 0.0, %v2204
          %v2206 = vpop.f32.mrb[0].mxu0
          %2207 = vmatprep.mubr.bf16.mxu0 %v2116
          %2208 = vmatmul.mubr.bf16.gmra.mrb[0].mxu0 %v2084
          %v2209 = vpop.f32.mrb[0].mxu0
          %v2210 = vadd.f32 0.0, %v2209
          %v2211 = vpop.f32.mrb[0].mxu0
          %v2212 = vpop.f32.mrb[0].mxu0
          %v2213 = vadd.f32 0.0, %v2212
          %v2214 = vpop.f32.mrb[0].mxu0
          %2215 = vmatprep.mubr.bf16.mxu0 %v2117
          %2216 = vmatmul.mubr.bf16.gmra.mrb[0].mxu0 %v2085
          %v2217 = vpop.f32.mrb[0].mxu0
          %v2218 = vadd.f32 0.0, %v2217
          %v2219 = vpop.f32.mrb[0].mxu0
          %v2220 = vpop.f32.mrb[0].mxu0
          %v2221 = vadd.f32 0.0, %v2220
          %v2222 = vpop.f32.mrb[0].mxu0
          %2223 = vmatprep.mubr.bf16.mxu0 %v2118
          %2224 = vmatmul.mubr.bf16.gmra.mrb[0].mxu0 %v2086
          %v2225 = vpop.f32.mrb[0].mxu0
          %v2226 = vadd.f32 0.0, %v2225
          %v2227 = vpop.f32.mrb[0].mxu0
          %v2228 = vpop.f32.mrb[0].mxu0
          %v2229 = vadd.f32 0.0, %v2228
          %v2230 = vpop.f32.mrb[0].mxu0
          %2231 = vmatprep.mubr.bf16.mxu0 %v2127
          %2232 = vmatmul.mubr.bf16.gmra.mrb[0].mxu0 %v2095
          %v2233 = vpop.f32.mrb[0].mxu0
          %v2234 = vadd.f32 0.0, %v2233
          %v2235 = vpop.f32.mrb[0].mxu0
          %v2236 = vpop.f32.mrb[0].mxu0
          %v2237 = vadd.f32 0.0, %v2236
          %v2238 = vpop.f32.mrb[0].mxu0
          %2239 = vmatprep.mubr.bf16.mxu0 %v2128
          %2240 = vmatmul.mubr.bf16.gmra.mrb[0].mxu0 %v2096
          %v2241 = vpop.f32.mrb[0].mxu0
          %v2242 = vadd.f32 0.0, %v2241
          %v2243 = vpop.f32.mrb[0].mxu0
          %v2244 = vpop.f32.mrb[0].mxu0
          %v2245 = vadd.f32 0.0, %v2244
          %v2246 = vpop.f32.mrb[0].mxu0
          %2247 = vmatprep.mubr.bf16.mxu0 %v2129
          %2248 = vmatmul.mubr.bf16.gmra.mrb[0].mxu0 %v2097
          %v2249 = vpop.f32.mrb[0].mxu0
          %v2250 = vadd.f32 0.0, %v2249
          %v2251 = vpop.f32.mrb[0].mxu0
          %v2252 = vpop.f32.mrb[0].mxu0
          %v2253 = vadd.f32 0.0, %v2252
          %v2254 = vpop.f32.mrb[0].mxu0
          %2255 = vmatprep.mubr.bf16.mxu0 %v2130
          %2256 = vmatmul.mubr.bf16.gmra.mrb[0].mxu0 %v2098
          %v2257 = vpop.f32.mrb[0].mxu0
          %v2258 = vadd.f32 0.0, %v2257
          %v2259 = vpop.f32.mrb[0].mxu0
          %v2260 = vpop.f32.mrb[0].mxu0
          %v2261 = vadd.f32 0.0, %v2260
          %v2262 = vpop.f32.mrb[0].mxu0
          %2263 = vmatprep.mubr.bf16.mxu0 %v2131
          %2264 = vmatmul.mubr.bf16.gmra.mrb[0].mxu0 %v2099
          %v2265 = vpop.f32.mrb[0].mxu0
          %v2266 = vadd.f32 0.0, %v2265
          %v2267 = vpop.f32.mrb[0].mxu0
          %v2268 = vpop.f32.mrb[0].mxu0
          %v2269 = vadd.f32 0.0, %v2268
          %v2270 = vpop.f32.mrb[0].mxu0
          %2271 = vmatprep.mubr.bf16.mxu0 %v2132
          %2272 = vmatmul.mubr.bf16.gmra.mrb[0].mxu0 %v2100
          %v2273 = vpop.f32.mrb[0].mxu0
          %v2274 = vadd.f32 0.0, %v2273
          %v2275 = vpop.f32.mrb[0].mxu0
          %v2276 = vpop.f32.mrb[0].mxu0
          %v2277 = vadd.f32 0.0, %v2276
          %v2278 = vpop.f32.mrb[0].mxu0
          %2279 = vmatprep.mubr.bf16.mxu0 %v2133
          %2280 = vmatmul.mubr.bf16.gmra.mrb[0].mxu0 %v2101
          %v2281 = vpop.f32.mrb[0].mxu0
          %v2282 = vadd.f32 0.0, %v2281
          %v2283 = vpop.f32.mrb[0].mxu0
          %v2284 = vpop.f32.mrb[0].mxu0
          %v2285 = vadd.f32 0.0, %v2284
          %v2286 = vpop.f32.mrb[0].mxu0
          %2287 = vmatprep.mubr.bf16.mxu0 %v2134
          %2288 = vmatmul.mubr.bf16.gmra.mrb[0].mxu0 %v2102
          %v2289 = vpop.f32.mrb[0].mxu0
          %v2290 = vadd.f32 0.0, %v2289
          %v2291 = vpop.f32.mrb[0].mxu0
          %v2292 = vpop.f32.mrb[0].mxu0
          %v2293 = vadd.f32 0.0, %v2292
          %v2294 = vpop.f32.mrb[0].mxu0
          %2295 = vdwg.mxu0
          %s2296 = scalar_lea.vmem [#allocation12], %s1717
          %v2297 = vld [vmem:[%s2296] sm:$0xff]
          %v2298 = vld [vmem:[%s2296 + $0x8] sm:$0xff]
          %v2299 = vld [vmem:[%s2296 + $0x10] sm:$0xff]
          %v2300 = vld [vmem:[%s2296 + $0x18] sm:$0xff]
          %v2301 = vld [vmem:[%s2296 + $0x20] sm:$0xff]
          %v2302 = vld [vmem:[%s2296 + $0x28] sm:$0xff]
          %v2303 = vld [vmem:[%s2296 + $0x30] sm:$0xff]
          %v2304 = vld [vmem:[%s2296 + $0x38] sm:$0xff]
          %v2305 = vld [vmem:[%s2296 + $0x40] sm:$0xff]
          %v2306 = vld [vmem:[%s2296 + $0x48] sm:$0xff]
          %v2307 = vld [vmem:[%s2296 + $0x50] sm:$0xff]
          %v2308 = vld [vmem:[%s2296 + $0x58] sm:$0xff]
          %v2309 = vld [vmem:[%s2296 + $0x60] sm:$0xff]
          %v2310 = vld [vmem:[%s2296 + $0x68] sm:$0xff]
          %v2311 = vld [vmem:[%s2296 + $0x70] sm:$0xff]
          %v2312 = vld [vmem:[%s2296 + $0x78] sm:$0xff]
          %v2313 = vld [vmem:[%s2296 + $0x80] sm:$0xff]
          %v2314 = vld [vmem:[%s2296 + $0x88] sm:$0xff]
          %v2315 = vld [vmem:[%s2296 + $0x90] sm:$0xff]
          %v2316 = vld [vmem:[%s2296 + $0x98] sm:$0xff]
          %v2317 = vld [vmem:[%s2296 + $0xa0] sm:$0xff]
          %v2318 = vld [vmem:[%s2296 + $0xa8] sm:$0xff]
          %v2319 = vld [vmem:[%s2296 + $0xb0] sm:$0xff]
          %v2320 = vld [vmem:[%s2296 + $0xb8] sm:$0xff]
          %v2321 = vld [vmem:[%s2296 + $0xc0] sm:$0xff]
          %v2322 = vld [vmem:[%s2296 + $0xc8] sm:$0xff]
          %v2323 = vld [vmem:[%s2296 + $0xd0] sm:$0xff]
          %v2324 = vld [vmem:[%s2296 + $0xd8] sm:$0xff]
          %v2325 = vld [vmem:[%s2296 + $0xe0] sm:$0xff]
          %v2326 = vld [vmem:[%s2296 + $0xe8] sm:$0xff]
          %v2327 = vld [vmem:[%s2296 + $0xf0] sm:$0xff]
          %v2328 = vld [vmem:[%s2296 + $0xf8] sm:$0xff]
          %v2329 = vadd.f32 %v2297, %v2170
          %v2330 = vadd.f32 %v2298, %v2173
          %v2331 = vadd.f32 %v2299, %v2178
          %v2332 = vadd.f32 %v2300, %v2181
          %v2333 = vadd.f32 %v2301, %v2186
          %v2334 = vadd.f32 %v2302, %v2189
          %v2335 = vadd.f32 %v2303, %v2194
          %v2336 = vadd.f32 %v2304, %v2197
          %v2337 = vadd.f32 %v2305, %v2202
          %v2338 = vadd.f32 %v2306, %v2205
          %v2339 = vadd.f32 %v2307, %v2210
          %v2340 = vadd.f32 %v2308, %v2213
          %v2341 = vadd.f32 %v2309, %v2218
          %v2342 = vadd.f32 %v2310, %v2221
          %v2343 = vadd.f32 %v2311, %v2226
          %v2344 = vadd.f32 %v2312, %v2229
          %v2345 = vadd.f32 %v2313, %v2234
          %v2346 = vadd.f32 %v2314, %v2237
          %v2347 = vadd.f32 %v2315, %v2242
          %v2348 = vadd.f32 %v2316, %v2245
          %v2349 = vadd.f32 %v2317, %v2250
          %v2350 = vadd.f32 %v2318, %v2253
          %v2351 = vadd.f32 %v2319, %v2258
          %v2352 = vadd.f32 %v2320, %v2261
          %v2353 = vadd.f32 %v2321, %v2266
          %v2354 = vadd.f32 %v2322, %v2269
          %v2355 = vadd.f32 %v2323, %v2274
          %v2356 = vadd.f32 %v2324, %v2277
          %v2357 = vadd.f32 %v2325, %v2282
          %v2358 = vadd.f32 %v2326, %v2285
          %v2359 = vadd.f32 %v2327, %v2290
          %v2360 = vadd.f32 %v2328, %v2293
          %2361 = vst [vmem:[%s2296] sm:$0xff] %v2329
          %2362 = vst [vmem:[%s2296 + $0x8] sm:$0xff] %v2330
          %2363 = vst [vmem:[%s2296 + $0x10] sm:$0xff] %v2331
          %2364 = vst [vmem:[%s2296 + $0x18] sm:$0xff] %v2332
          %2365 = vst [vmem:[%s2296 + $0x20] sm:$0xff] %v2333
          %2366 = vst [vmem:[%s2296 + $0x28] sm:$0xff] %v2334
          %2367 = vst [vmem:[%s2296 + $0x30] sm:$0xff] %v2335
          %2368 = vst [vmem:[%s2296 + $0x38] sm:$0xff] %v2336
          %2369 = vst [vmem:[%s2296 + $0x40] sm:$0xff] %v2337
          %2370 = vst [vmem:[%s2296 + $0x48] sm:$0xff] %v2338
          %2371 = vst [vmem:[%s2296 + $0x50] sm:$0xff] %v2339
          %2372 = vst [vmem:[%s2296 + $0x58] sm:$0xff] %v2340
          %2373 = vst [vmem:[%s2296 + $0x60] sm:$0xff] %v2341
          %2374 = vst [vmem:[%s2296 + $0x68] sm:$0xff] %v2342
          %2375 = vst [vmem:[%s2296 + $0x70] sm:$0xff] %v2343
          %2376 = vst [vmem:[%s2296 + $0x78] sm:$0xff] %v2344
          %2377 = vst [vmem:[%s2296 + $0x80] sm:$0xff] %v2345
          %2378 = vst [vmem:[%s2296 + $0x88] sm:$0xff] %v2346
          %2379 = vst [vmem:[%s2296 + $0x90] sm:$0xff] %v2347
          %2380 = vst [vmem:[%s2296 + $0x98] sm:$0xff] %v2348
          %2381 = vst [vmem:[%s2296 + $0xa0] sm:$0xff] %v2349
          %2382 = vst [vmem:[%s2296 + $0xa8] sm:$0xff] %v2350
          %2383 = vst [vmem:[%s2296 + $0xb0] sm:$0xff] %v2351
          %2384 = vst [vmem:[%s2296 + $0xb8] sm:$0xff] %v2352
          %2385 = vst [vmem:[%s2296 + $0xc0] sm:$0xff] %v2353
          %2386 = vst [vmem:[%s2296 + $0xc8] sm:$0xff] %v2354
          %2387 = vst [vmem:[%s2296 + $0xd0] sm:$0xff] %v2355
          %2388 = vst [vmem:[%s2296 + $0xd8] sm:$0xff] %v2356
          %2389 = vst [vmem:[%s2296 + $0xe0] sm:$0xff] %v2357
          %2390 = vst [vmem:[%s2296 + $0xe8] sm:$0xff] %v2358
          %2391 = vst [vmem:[%s2296 + $0xf0] sm:$0xff] %v2359
          %2392 = vst [vmem:[%s2296 + $0xf8] sm:$0xff] %v2360
        $region69: #{tpu_custom_call.1} parent=47 // loop_footer
          %s1714 = sadd.s32 %s1712, 1
        $region70: #{tpu_custom_call.1} parent=47 // loop_footer_branch
          %1711 = sbr.rel target = $region66
        $region71: #{tpu_custom_call.1} parent=47 // loop_exit
          _
        %s2393 = sand.u32 %s225, 1
        %s2394 = scalar_lea.sflag [#allocation14], %s2393
        %s2395 = sand.u32 %s225, 1
        %s2396 = smul.addr %s2395, 2
        %s2397 = scalar_lea.vmem [#allocation13], %s2396
        // Predicated region
        $region72: #{tpu_custom_call.1} parent=47 // pred_check
          %p2398 = pneg %p209
        $region73: #{tpu_custom_call.1} parent=47 // pred_check_branch
          %2400 = sbr.rel (%p2398) target = $region75
        $region74: #{tpu_custom_call.1} parent=47 // pred_region
          %s2402 = ssub.s32 4096, 4096
          %2403 = vsyncadd [#allocation8], %s2402
          %s2404 = sshll.u32 [#allocation12], 4
          %s2405 = int_to_ptr.vmem [resolvable:$true] %s2404
          %2410 = dma.vmem_to_hbm [thread:$0]  %s2405, 4096, %s9, [#allocation8], 128, 128, 8
        $region75: #{tpu_custom_call.1} parent=47 // pred_fallthru
          _
        // Predicated region
        $region76: #{tpu_custom_call.1} parent=47 // pred_check
          %p2411 = pneg %p235
        $region77: #{tpu_custom_call.1} parent=47 // pred_check_branch
          %2413 = sbr.rel (%p2411) target = $region79
        $region78: #{tpu_custom_call.1} parent=47 // pred_region
          %s2414 = smul.u32 2, %s39
          %s2416 = ssub.s32 32, 32
          %2417 = vsyncadd %s2394, %s2416
          %s2418 = smul.addr %s2414, 16
          %s2419 = scalar_lea.hbm %s10, %s2418
          %s2421 = sshll.u32 %s2397, 4
          %s2422 = int_to_ptr.vmem [resolvable:$true] %s2421
          %2424 = dma.vmem_to_hbm [thread:$0]  %s2422, 32, %s2419, %s2394
        $region79: #{tpu_custom_call.1} parent=47 // pred_fallthru
          _
        // Predicated region
        $region80: #{tpu_custom_call.1} parent=47 // pred_check
          %p2425 = pneg %p209
        $region81: #{tpu_custom_call.1} parent=47 // pred_check_branch
          %2427 = sbr.rel (%p2425) target = $region83
        $region82: #{tpu_custom_call.1} parent=47 // pred_region
          %2428 = dma.done [#allocation8], 4096
        $region83: #{tpu_custom_call.1} parent=47 // pred_fallthru
          _
      $region48: #{tpu_custom_call.1} parent=5 // pred_fallthru
        _
      %p2429 = scmp.le.s32.totalorder 2, %s34
      // Predicated region
      $region84: #{tpu_custom_call.1} parent=5 // pred_check
        %p2430 = pneg %p2429
      $region85: #{tpu_custom_call.1} parent=5 // pred_check_branch
        %2432 = sbr.rel (%p2430) target = $region87
      $region86: #{tpu_custom_call.1} parent=5 // pred_region
        %s2433 = ssub.s32 %s34, 2
        // Predicated region
        $region88: #{tpu_custom_call.1} parent=86 // pred_check
          %p2434 = pneg %p241
        $region89: #{tpu_custom_call.1} parent=86 // pred_check_branch
          %2436 = sbr.rel (%p2434) target = $region91
        $region90: #{tpu_custom_call.1} parent=86 // pred_region
          %s2437 = sand.u32 %s226, 1
          %s2438 = scalar_lea.sflag [#allocation14], %s2437
          %s2439 = sand.u32 %s226, 1
          %s2440 = smul.addr %s2439, 2
          %s2441 = scalar_lea.vmem [#allocation13], %s2440
          %2442 = dma.done %s2438, 32
        $region91: #{tpu_custom_call.1} parent=86 // pred_fallthru
          _
      $region87: #{tpu_custom_call.1} parent=5 // pred_fallthru
        _
    $region6: #{tpu_custom_call.1} parent=1 // loop_footer
      %s38 = sadd.s32 1, %s34
    $region7: #{tpu_custom_call.1} parent=1 // loop_footer_branch
      %33 = sbr.rel target = $region3
    $region8: #{tpu_custom_call.1} parent=1 // loop_exit
      _
    %2443 = vsyncpa [#allocation7], 1
    %s2444 = scalar_lea.sflag [#allocation7], 1
    %2445 = vsyncpa %s2444, 1
    %2446 = vsyncpa [#allocation10], 1
    %2447 = vsyncpa [#allocation8], 1
    %s2448 = scalar_lea.sflag [#allocation8], 1
    %2449 = vsyncpa %s2448, 1
    %2450 = vsyncpa [#allocation14], 1
    %s2451 = scalar_lea.sflag [#allocation14], 1
    %2452 = vsyncpa %s2451, 1

</llo_original>
